<compile_context>
chip_gen: v6e
topology: v6e:2x2x1
jax: 0.10.0
libtpu: 0.0.40
codegen_flags: <defaults>
</compile_context>

<pallas_src>
import numpy as np
import jax
import jax.numpy as jnp
from jax.experimental import pallas as pl
from jax.experimental.pallas import tpu as pltpu

_F32 = jnp.float32
_BF16 = jnp.bfloat16


def _layer_norm(x, gamma, beta, eps=1e-5):
    m = jnp.mean(x, axis=-1, keepdims=True)
    v = jnp.mean((x - m) ** 2, axis=-1, keepdims=True)
    return (x - m) * jax.lax.rsqrt(v + eps) * gamma + beta


def _softplus(x):
    # numerically stable log(1 + exp(x))
    return jnp.maximum(x, 0.0) + jnp.log(1.0 + jnp.exp(-jnp.abs(x)))


def _mean2d(x):
    # full mean of a rank-2 array, kept as (1, 1) to stay vector-friendly
    s = jnp.sum(x, axis=1, keepdims=True)
    s = jnp.sum(s, axis=0, keepdims=True)
    return s / float(x.shape[0] * x.shape[1])


def _rnd(n, m):
    return (n + m - 1) // m * m


def _graph_vae_forward(x, a_enc, a_dec, edge_pairs, eps, params, labels,
                       tau, pos_weight, beta):
    """Fused GraphVAE forward. Returns (loss, recon, kl) as a (3,) f32 array."""
    N, in_dim = x.shape
    hid_dim = params["w1"].shape[1]
    z_dim = params["wmu"].shape[1]
    dec_hidden = params["wm1"].shape[1]
    E = edge_pairs.shape[1]

    # -------- device-side (jit-traceable) parameter packing: 2 buffers --------
    # 128-lane-wide, bf16 weights with 16-aligned row offsets (bf16 sublane
    # packing) -> every in-kernel slice is aligned and unmasked.
    width = max(128, _rnd(max(hid_dim, 2 * z_dim, dec_hidden, z_dim), 128))
    r_w1 = 0
    r_muvar = r_w1 + _rnd(in_dim, 16)
    r_wc1 = r_muvar + _rnd(hid_dim, 16)
    r_wc2 = r_wc1 + _rnd(z_dim, 16)
    r_wm1 = r_wc2 + _rnd(z_dim, 16)
    r_wm2 = r_wm1 + _rnd(4 * z_dim, 16)
    rows = r_wm2 + _rnd(dec_hidden, 16)

    wmuvar_p = jnp.concatenate([params["wmu"], params["wlv"]], axis=1)
    wpack = jnp.zeros((rows, width), _F32)
    wpack = wpack.at[r_w1:r_w1 + in_dim, :hid_dim].set(params["w1"])
    wpack = wpack.at[r_muvar:r_muvar + hid_dim, :2 * z_dim].set(wmuvar_p)
    wpack = wpack.at[r_wc1:r_wc1 + z_dim, :z_dim].set(params["wc1"])
    wpack = wpack.at[r_wc2:r_wc2 + z_dim, :z_dim].set(params["wc2"])
    wpack = wpack.at[r_wm1:r_wm1 + 4 * z_dim, :dec_hidden].set(params["wm1"])
    wpack = wpack.at[r_wm2:r_wm2 + dec_hidden, :1].set(params["wm2"])
    wpack = wpack.astype(_BF16)

    bpack = jnp.zeros((8, width), _F32)
    bpack = bpack.at[0, :hid_dim].set(params["b1"].reshape(-1))
    bpack = bpack.at[1, :hid_dim].set(params["g1"].reshape(-1))
    bpack = bpack.at[2, :hid_dim].set(params["be1"].reshape(-1))
    bpack = bpack.at[3, :2 * z_dim].set(
        jnp.concatenate([params["bmu"].reshape(-1), params["blv"].reshape(-1)]))
    bpack = bpack.at[4, :z_dim].set(params["bc1"].reshape(-1))
    bpack = bpack.at[5, :z_dim].set(params["bc2"].reshape(-1))
    bpack = bpack.at[6, :dec_hidden].set(params["bm1"].reshape(-1))
    bpack = bpack.at[7, :1].set(params["bm2"].reshape(-1))

    # endpoint indices: rows 0:E pick u, rows E:2E pick v
    uv_idx = jnp.concatenate([edge_pairs[0], edge_pairs[1]]
                             ).astype(jnp.int32).reshape(2 * E, 1)

    inv_tau = 1.0 / jnp.maximum(jnp.asarray(tau, _F32), 1e-4)
    scalars = jnp.stack([inv_tau,
                         jnp.asarray(pos_weight, _F32),
                         jnp.asarray(beta, _F32),
                         jnp.asarray(0.0, _F32)])

    # ------------------------------- kernel ----------------------------------
    def kernel(x_ref, a_enc_ref, a_dec_ref, uv_ref, eps_ref,
               wp_ref, bp_ref, labels_ref, scalars_ref, out_ref):
        xv = x_ref[...]                           # (N, in_dim) bf16
        a_e = a_enc_ref[...]                      # (N, N)      bf16
        a_d = a_dec_ref[...]                      # (N, N)      bf16

        # one f32 bias row each (static, sublane-aligned slices)
        b1 = bp_ref[0:1, 0:hid_dim]
        g1 = bp_ref[1:2, 0:hid_dim]
        be1 = bp_ref[2:3, 0:hid_dim]
        bmuvar = bp_ref[3:4, 0:2 * z_dim]
        bc1 = bp_ref[4:5, 0:z_dim]
        bc2 = bp_ref[5:6, 0:z_dim]
        bm1 = bp_ref[6:7, 0:dec_hidden]
        bm2 = bp_ref[7:8, 0:1]

        # ---- Encoder: GCNConv(in,hid) (no self-loops/no norm) -> LN -> ReLU
        w1 = wp_ref[r_w1:r_w1 + in_dim, 0:hid_dim]
        xw = jnp.dot(xv, w1, preferred_element_type=_F32)
        h1 = jnp.dot(a_e, xw.astype(_BF16), preferred_element_type=_F32) + b1
        h1 = jnp.maximum(_layer_norm(h1, g1, be1), 0.0)
        # TODO(synk): F.dropout omitted (forward evaluated in eval mode -> identity).

        # ---- fused mu/logvar head: single matmul pair then static lane split
        # TODO(synk): align the logvar split on a 128-lane boundary when dims grow.
        wmuvar = wp_ref[r_muvar:r_muvar + hid_dim, 0:2 * z_dim]
        hw = jnp.dot(h1.astype(_BF16), wmuvar, preferred_element_type=_F32)
        muvar = jnp.dot(a_e, hw.astype(_BF16), preferred_element_type=_F32) + bmuvar
        mu = muvar[:, 0:z_dim]
        logvar = muvar[:, z_dim:2 * z_dim]

        # reparameterization: z = mu + eps * exp(0.5 * logvar)
        z = mu + eps_ref[...] * jnp.exp(0.5 * logvar)

        # ---- EdgeDecoder message passing: 2 x (normalized GCN + ReLU) ----
        wc1 = wp_ref[r_wc1:r_wc1 + z_dim, 0:z_dim]
        wc2 = wp_ref[r_wc2:r_wc2 + z_dim, 0:z_dim]
        zw = jnp.dot(z.astype(_BF16), wc1, preferred_element_type=_F32)
        h = jnp.maximum(
            jnp.dot(a_d, zw.astype(_BF16), preferred_element_type=_F32) + bc1, 0.0)
        hw2 = jnp.dot(h.astype(_BF16), wc2, preferred_element_type=_F32)
        h = jnp.maximum(
            jnp.dot(a_d, hw2.astype(_BF16), preferred_element_type=_F32) + bc2, 0.0)

        # ---- edge endpoint gather: build the one-hot selector in-register
        # from int32 indices (no dense (2E,N) selector DMA), one MXU push.
        # TODO(synk): at realistic E/N switch to scalar-prefetched row gathers.
        idx = uv_ref[...]                                              # (2E, 1) i32
        col = jax.lax.broadcasted_iota(jnp.int32, (2 * E, N), 1)
        sel = jnp.where(col == idx, 1.0, 0.0).astype(_BF16)            # (2E, N)
        huv = jnp.dot(sel, h.astype(_BF16), preferred_element_type=_F32)
        h_u = huv[0:E, :]
        h_v = huv[E:2 * E, :]
        d = jnp.abs(h_u - h_v)
        p = h_u * h_v

        # ---- edge MLP: wm1 split into 4 row blocks (no lane concat of phi).
        # TODO(synk): on v5e/v6e re-fuse via pltpu.roll lane packing; the split
        # form is the cheaper one on v7x (MRB accumulates in place).
        w1a = wp_ref[r_wm1 + 0 * z_dim:r_wm1 + 1 * z_dim, 0:dec_hidden]
        w1b = wp_ref[r_wm1 + 1 * z_dim:r_wm1 + 2 * z_dim, 0:dec_hidden]
        w1c = wp_ref[r_wm1 + 2 * z_dim:r_wm1 + 3 * z_dim, 0:dec_hidden]
        w1d = wp_ref[r_wm1 + 3 * z_dim:r_wm1 + 4 * z_dim, 0:dec_hidden]
        hid_e = jnp.maximum(
            jnp.dot(h_u.astype(_BF16), w1a, preferred_element_type=_F32)
            + jnp.dot(h_v.astype(_BF16), w1b, preferred_element_type=_F32)
            + jnp.dot(d.astype(_BF16), w1c, preferred_element_type=_F32)
            + jnp.dot(p.astype(_BF16), w1d, preferred_element_type=_F32)
            + bm1, 0.0)

        wm2 = wp_ref[r_wm2:r_wm2 + dec_hidden, 0:1]
        logits = jnp.dot(hid_e.astype(_BF16), wm2,
                         preferred_element_type=_F32) + bm2             # (E, 1)

        inv_tau_s = scalars_ref[0]   # device-computed 1 / clamp(tau, 1e-4)
        pos_w = scalars_ref[1]
        beta_s = scalars_ref[2]
        logits = logits * inv_tau_s

        # ---- losses (BCE-with-logits with pos_weight, mean; KL; total) ----
        # TODO(synk): relayout logits/labels lane-dense once E grows past a few
        # hundred (EUP/VPU occupancy).
        y = labels_ref[...]                                              # (E, 1)
        recon_el = pos_w * y * _softplus(-logits) + (1.0 - y) * _softplus(logits)
        recon = _mean2d(recon_el)                                        # (1, 1)
        kl = -0.5 * _mean2d(1.0 + logvar - mu * mu - jnp.exp(logvar))    # (1, 1)
        loss = recon + beta_s * kl                                       # (1, 1)

        # lane-dense output row: [loss, recon, kl, 0, ..., 0] -> unmasked vst
        lane = jax.lax.broadcasted_iota(jnp.int32, (1, 128), 1)
        out_ref[...] = (jnp.where(lane == 0, loss, 0.0)
                        + jnp.where(lane == 1, recon, 0.0)
                        + jnp.where(lane == 2, kl, 0.0))

    vmem = pl.BlockSpec(memory_space=pltpu.MemorySpace.VMEM)
    smem = pl.BlockSpec(memory_space=pltpu.MemorySpace.SMEM)

    out = pl.pallas_call(
        kernel,
        out_shape=jax.ShapeDtypeStruct((1, 128), _F32),
        in_specs=[vmem] * 8 + [smem],
        out_specs=vmem,
        compiler_params=pltpu.CompilerParams(
            vmem_limit_bytes=32 * 1024 * 1024),
    )(x.astype(_BF16), a_enc.astype(_BF16), a_dec.astype(_BF16), uv_idx,
      eps, wpack, bpack, labels, scalars)
    # TODO(synk): batch graphs along a leading "parallel" grid axis and tile
    # A/edges with BlockSpecs (per-generation tile sizes) before scaling N/E.
    return out[0, :3]  # (loss, recon, kl)


graph_vae_forward = jax.jit(_graph_vae_forward)


if __name__ == "__main__":
    # small, deterministic shapes consistent with the module
    N = 16           # nodes
    in_dim = 8       # GraphVAE in_dim
    hid_dim = 32     # GraphVAE hid_dim
    z_dim = 16       # GraphVAE z_dim
    dec_hidden = 64  # EdgeDecoder hidden
    neg_ratio = 5

    key = jax.random.PRNGKey(0)
    keys = jax.random.split(key, 20)

    # synthetic undirected ring graph: edge_index holds both directions
    src = np.arange(N)
    dst = (np.arange(N) + 1) % N
    edge_index = np.concatenate(
        [np.stack([src, dst]), np.stack([dst, src])], axis=1).astype(np.int32)  # (2, 2N)

    # encoder adjacency (no self loops, no normalization): A[d, s] = 1 for edge s->d
    A_enc = np.zeros((N, N), np.float32)
    A_enc[edge_index[1], edge_index[0]] = 1.0

    # unique positive edges (i < j)
    mask = edge_index[0] < edge_index[1]
    pos_edge = edge_index[:, mask]                     # (2, P)
    P = pos_edge.shape[1]

    # deterministic negative sampling over i<j non-edges (stand-in for
    # torch_geometric.utils.negative_sampling, which is random anyway)
    pos_set = set(map(tuple, pos_edge.T.tolist()))
    cand = np.array([(i, j) for i in range(N) for j in range(i + 1, N)
                     if (i, j) not in pos_set], dtype=np.int32)
    num_neg = neg_ratio * P
    perm = np.asarray(jax.random.permutation(keys[0], cand.shape[0]))
    neg_edge = cand[perm[:num_neg]].T                  # (2, num_neg)

    edge_pairs = np.concatenate([pos_edge, neg_edge], axis=1).astype(np.int32)  # (2, E)
    E = edge_pairs.shape[1]

    # decoder message-passing adjacency: PyG GCNConv defaults applied to the
    # DIRECTED i<j positive edge list the PyTorch module passes to the decoder
    # (add self loops + D^{-1/2} (A+I) D^{-1/2}; no symmetrization, matching GCNConv)
    rows = np.concatenate([pos_edge[0], np.arange(N)])  # sources
    cols = np.concatenate([pos_edge[1], np.arange(N)])  # targets
    deg = np.zeros(N, np.float32)
    np.add.at(deg, cols, 1.0)
    dinv = 1.0 / np.sqrt(np.maximum(deg, 1e-12))
    A_dec = np.zeros((N, N), np.float32)
    A_dec[cols, rows] = dinv[rows] * dinv[cols]        # out[col] += norm * x[row]

    labels = np.concatenate(
        [np.ones(P, np.float32), np.zeros(num_neg, np.float32)])[:, None]  # (E, 1)
    pos_weight = float(num_neg) / float(P)

    x = jax.random.normal(keys[1], (N, in_dim), jnp.float32)
    eps = jax.random.normal(keys[2], (N, z_dim), jnp.float32)  # randn_like(mu)

    def init(k, shape, scale=0.1):
        return scale * jax.random.normal(k, shape, jnp.float32)

    params = dict(
        w1=init(keys[3], (in_dim, hid_dim)),
        b1=init(keys[4], (1, hid_dim)),
        g1=jnp.ones((1, hid_dim), jnp.float32),    # LayerNorm weight
        be1=jnp.zeros((1, hid_dim), jnp.float32),  # LayerNorm bias
        wmu=init(keys[5], (hid_dim, z_dim)),
        bmu=init(keys[6], (1, z_dim)),
        wlv=init(keys[7], (hid_dim, z_dim)),
        blv=init(keys[8], (1, z_dim)),
        wc1=init(keys[9], (z_dim, z_dim)),
        bc1=init(keys[10], (1, z_dim)),
        wc2=init(keys[11], (z_dim, z_dim)),
        bc2=init(keys[12], (1, z_dim)),
        wm1=init(keys[13], (4 * z_dim, dec_hidden)),
        bm1=init(keys[14], (1, dec_hidden)),
        wm2=init(keys[15], (dec_hidden, 1)),
        bm2=init(keys[16], (1, 1)),
    )

    out = graph_vae_forward(
        x, jnp.asarray(A_enc), jnp.asarray(A_dec), jnp.asarray(edge_pairs),
        eps, params, jnp.asarray(labels),
        1.0, pos_weight, 1.0)
    out = jax.block_until_ready(out)
    loss, recon, kl = (float(v) for v in out)
    assert np.isfinite(loss) and np.isfinite(recon) and np.isfinite(kl)
    print("KERNEL_OK")
</pallas_src>

<mosaic_0001>
module attributes {stable_mosaic.version = 11 : i64} {
  func.func @kernel(%arg0: memref<16x8xbf16, #tpu.memory_space<vmem>>, %arg1: memref<16x16xbf16, #tpu.memory_space<vmem>>, %arg2: memref<16x16xbf16, #tpu.memory_space<vmem>>, %arg3: memref<192x1xi32, #tpu.memory_space<vmem>>, %arg4: memref<16x16xf32, #tpu.memory_space<vmem>>, %arg5: memref<208x128xbf16, #tpu.memory_space<vmem>>, %arg6: memref<8x128xf32, #tpu.memory_space<vmem>>, %arg7: memref<96x1xf32, #tpu.memory_space<vmem>>, %arg8: memref<4xf32, #tpu.memory_space<smem>>, %arg9: memref<1x128xf32, #tpu.memory_space<vmem>>) attributes {dimension_semantics = [], scalar_prefetch = 0 : i64, scratch_operands = 0 : i64, tpu.core_type = #tpu.core_type<tc>} {
    %c0 = arith.constant 0 : index
    %c0_0 = arith.constant 0 : index
    %0 = vector.load %arg0[%c0, %c0_0] : memref<16x8xbf16, #tpu.memory_space<vmem>>, vector<16x8xbf16>
    %c0_1 = arith.constant 0 : index
    %c0_2 = arith.constant 0 : index
    %1 = vector.load %arg1[%c0_1, %c0_2] : memref<16x16xbf16, #tpu.memory_space<vmem>>, vector<16x16xbf16>
    %c0_3 = arith.constant 0 : index
    %c0_4 = arith.constant 0 : index
    %2 = vector.load %arg2[%c0_3, %c0_4] : memref<16x16xbf16, #tpu.memory_space<vmem>>, vector<16x16xbf16>
    %c0_5 = arith.constant 0 : index
    %c0_6 = arith.constant 0 : index
    %3 = vector.load %arg6[%c0_5, %c0_6] : memref<8x128xf32, #tpu.memory_space<vmem>>, vector<1x32xf32>
    %c1 = arith.constant 1 : index
    %c0_7 = arith.constant 0 : index
    %4 = vector.load %arg6[%c1, %c0_7] : memref<8x128xf32, #tpu.memory_space<vmem>>, vector<1x32xf32>
    %c2 = arith.constant 2 : index
    %c0_8 = arith.constant 0 : index
    %5 = vector.load %arg6[%c2, %c0_8] : memref<8x128xf32, #tpu.memory_space<vmem>>, vector<1x32xf32>
    %c3 = arith.constant 3 : index
    %c0_9 = arith.constant 0 : index
    %6 = vector.load %arg6[%c3, %c0_9] : memref<8x128xf32, #tpu.memory_space<vmem>>, vector<1x32xf32>
    %c4 = arith.constant 4 : index
    %c0_10 = arith.constant 0 : index
    %7 = vector.load %arg6[%c4, %c0_10] : memref<8x128xf32, #tpu.memory_space<vmem>>, vector<1x16xf32>
    %c5 = arith.constant 5 : index
    %c0_11 = arith.constant 0 : index
    %8 = vector.load %arg6[%c5, %c0_11] : memref<8x128xf32, #tpu.memory_space<vmem>>, vector<1x16xf32>
    %c6 = arith.constant 6 : index
    %c0_12 = arith.constant 0 : index
    %9 = vector.load %arg6[%c6, %c0_12] : memref<8x128xf32, #tpu.memory_space<vmem>>, vector<1x64xf32>
    %c7 = arith.constant 7 : index
    %c0_13 = arith.constant 0 : index
    %10 = vector.load %arg6[%c7, %c0_13] : memref<8x128xf32, #tpu.memory_space<vmem>>, vector<1x1xf32>
    %c0_14 = arith.constant 0 : index
    %c0_15 = arith.constant 0 : index
    %11 = vector.load %arg5[%c0_14, %c0_15] : memref<208x128xbf16, #tpu.memory_space<vmem>>, vector<8x32xbf16>
    %cst = arith.constant dense<0.000000e+00> : vector<16x32xf32>
    %12 = tpu.matmul %0, %11, %cst {dimension_numbers = #tpu.dot_dimension_numbers<[1], [0], [0], [1], [0, 0, 1, 1], [], []>} : vector<16x8xbf16>, vector<8x32xbf16>, vector<16x32xf32> -> vector<16x32xf32>
    %13 = arith.truncf %12 : vector<16x32xf32> to vector<16x32xbf16>
    %cst_16 = arith.constant dense<0.000000e+00> : vector<16x32xf32>
    %14 = tpu.matmul %1, %13, %cst_16 {dimension_numbers = #tpu.dot_dimension_numbers<[1], [0], [0], [1], [0, 0, 1, 1], [], []>} : vector<16x16xbf16>, vector<16x32xbf16>, vector<16x32xf32> -> vector<16x32xf32>
    %15 = vector.broadcast %3 : vector<1x32xf32> to vector<16x32xf32>
    %16 = arith.addf %14, %15 : vector<16x32xf32>
    %cst_17 = arith.constant dense<0.000000e+00> : vector<16xf32>
    %17 = vector.multi_reduction <add>, %16, %cst_17 [1] : vector<16x32xf32> to vector<16xf32>
    %18 = vector.shape_cast %17 : vector<16xf32> to vector<16x1xf32>
    %cst_18 = arith.constant 3.200000e+01 : f32
    %19 = vector.broadcast %cst_18 : f32 to vector<16x1xf32>
    %20 = arith.divf %18, %19 : vector<16x1xf32>
    %21 = vector.broadcast %20 : vector<16x1xf32> to vector<16x32xf32>
    %22 = arith.subf %16, %21 : vector<16x32xf32>
    %23 = arith.mulf %22, %22 : vector<16x32xf32>
    %cst_19 = arith.constant dense<0.000000e+00> : vector<16xf32>
    %24 = vector.multi_reduction <add>, %23, %cst_19 [1] : vector<16x32xf32> to vector<16xf32>
    %25 = vector.shape_cast %24 : vector<16xf32> to vector<16x1xf32>
    %cst_20 = arith.constant 3.200000e+01 : f32
    %26 = vector.broadcast %cst_20 : f32 to vector<16x1xf32>
    %27 = arith.divf %25, %26 : vector<16x1xf32>
    %28 = vector.broadcast %20 : vector<16x1xf32> to vector<16x32xf32>
    %29 = arith.subf %16, %28 : vector<16x32xf32>
    %cst_21 = arith.constant 9.99999974E-6 : f32
    %30 = vector.broadcast %cst_21 : f32 to vector<16x1xf32>
    %31 = arith.addf %27, %30 : vector<16x1xf32>
    %32 = math.rsqrt %31 : vector<16x1xf32>
    %33 = vector.broadcast %32 : vector<16x1xf32> to vector<16x32xf32>
    %34 = arith.mulf %29, %33 : vector<16x32xf32>
    %35 = vector.broadcast %4 : vector<1x32xf32> to vector<16x32xf32>
    %36 = arith.mulf %34, %35 : vector<16x32xf32>
    %37 = vector.broadcast %5 : vector<1x32xf32> to vector<16x32xf32>
    %38 = arith.addf %36, %37 : vector<16x32xf32>
    %cst_22 = arith.constant 0.000000e+00 : f32
    %39 = vector.broadcast %cst_22 : f32 to vector<16x32xf32>
    %40 = arith.maximumf %38, %39 : vector<16x32xf32>
    %c16 = arith.constant 16 : index
    %c0_23 = arith.constant 0 : index
    %41 = vector.load %arg5[%c16, %c0_23] : memref<208x128xbf16, #tpu.memory_space<vmem>>, vector<32x32xbf16>
    %42 = arith.truncf %40 : vector<16x32xf32> to vector<16x32xbf16>
    %cst_24 = arith.constant dense<0.000000e+00> : vector<16x32xf32>
    %43 = tpu.matmul %42, %41, %cst_24 {dimension_numbers = #tpu.dot_dimension_numbers<[1], [0], [0], [1], [0, 0, 1, 1], [], []>} : vector<16x32xbf16>, vector<32x32xbf16>, vector<16x32xf32> -> vector<16x32xf32>
    %44 = arith.truncf %43 : vector<16x32xf32> to vector<16x32xbf16>
    %cst_25 = arith.constant dense<0.000000e+00> : vector<16x32xf32>
    %45 = tpu.matmul %1, %44, %cst_25 {dimension_numbers = #tpu.dot_dimension_numbers<[1], [0], [0], [1], [0, 0, 1, 1], [], []>} : vector<16x16xbf16>, vector<16x32xbf16>, vector<16x32xf32> -> vector<16x32xf32>
    %46 = vector.broadcast %6 : vector<1x32xf32> to vector<16x32xf32>
    %47 = arith.addf %45, %46 : vector<16x32xf32>
    %48 = vector.extract_strided_slice %47 {offsets = [0, 0], sizes = [16, 16], strides = [1, 1]} : vector<16x32xf32> to vector<16x16xf32>
    %49 = vector.extract_strided_slice %47 {offsets = [0, 16], sizes = [16, 16], strides = [1, 1]} : vector<16x32xf32> to vector<16x16xf32>
    %c0_26 = arith.constant 0 : index
    %c0_27 = arith.constant 0 : index
    %50 = vector.load %arg4[%c0_26, %c0_27] : memref<16x16xf32, #tpu.memory_space<vmem>>, vector<16x16xf32>
    %cst_28 = arith.constant 5.000000e-01 : f32
    %51 = vector.broadcast %cst_28 : f32 to vector<16x16xf32>
    %52 = arith.mulf %51, %49 : vector<16x16xf32>
    %53 = math.exp %52 : vector<16x16xf32>
    %54 = arith.mulf %50, %53 : vector<16x16xf32>
    %55 = arith.addf %48, %54 : vector<16x16xf32>
    %c48 = arith.constant 48 : index
    %c0_29 = arith.constant 0 : index
    %56 = vector.load %arg5[%c48, %c0_29] : memref<208x128xbf16, #tpu.memory_space<vmem>>, vector<16x16xbf16>
    %c64 = arith.constant 64 : index
    %c0_30 = arith.constant 0 : index
    %57 = vector.load %arg5[%c64, %c0_30] : memref<208x128xbf16, #tpu.memory_space<vmem>>, vector<16x16xbf16>
    %58 = arith.truncf %55 : vector<16x16xf32> to vector<16x16xbf16>
    %cst_31 = arith.constant dense<0.000000e+00> : vector<16x16xf32>
    %59 = tpu.matmul %58, %56, %cst_31 {dimension_numbers = #tpu.dot_dimension_numbers<[1], [0], [0], [1], [0, 0, 1, 1], [], []>} : vector<16x16xbf16>, vector<16x16xbf16>, vector<16x16xf32> -> vector<16x16xf32>
    %60 = arith.truncf %59 : vector<16x16xf32> to vector<16x16xbf16>
    %cst_32 = arith.constant dense<0.000000e+00> : vector<16x16xf32>
    %61 = tpu.matmul %2, %60, %cst_32 {dimension_numbers = #tpu.dot_dimension_numbers<[1], [0], [0], [1], [0, 0, 1, 1], [], []>} : vector<16x16xbf16>, vector<16x16xbf16>, vector<16x16xf32> -> vector<16x16xf32>
    %62 = vector.broadcast %7 : vector<1x16xf32> to vector<16x16xf32>
    %63 = arith.addf %61, %62 : vector<16x16xf32>
    %cst_33 = arith.constant 0.000000e+00 : f32
    %64 = vector.broadcast %cst_33 : f32 to vector<16x16xf32>
    %65 = arith.maximumf %63, %64 : vector<16x16xf32>
    %66 = arith.truncf %65 : vector<16x16xf32> to vector<16x16xbf16>
    %cst_34 = arith.constant dense<0.000000e+00> : vector<16x16xf32>
    %67 = tpu.matmul %66, %57, %cst_34 {dimension_numbers = #tpu.dot_dimension_numbers<[1], [0], [0], [1], [0, 0, 1, 1], [], []>} : vector<16x16xbf16>, vector<16x16xbf16>, vector<16x16xf32> -> vector<16x16xf32>
    %68 = arith.truncf %67 : vector<16x16xf32> to vector<16x16xbf16>
    %cst_35 = arith.constant dense<0.000000e+00> : vector<16x16xf32>
    %69 = tpu.matmul %2, %68, %cst_35 {dimension_numbers = #tpu.dot_dimension_numbers<[1], [0], [0], [1], [0, 0, 1, 1], [], []>} : vector<16x16xbf16>, vector<16x16xbf16>, vector<16x16xf32> -> vector<16x16xf32>
    %70 = vector.broadcast %8 : vector<1x16xf32> to vector<16x16xf32>
    %71 = arith.addf %69, %70 : vector<16x16xf32>
    %cst_36 = arith.constant 0.000000e+00 : f32
    %72 = vector.broadcast %cst_36 : f32 to vector<16x16xf32>
    %73 = arith.maximumf %71, %72 : vector<16x16xf32>
    %c0_37 = arith.constant 0 : index
    %c0_38 = arith.constant 0 : index
    %74 = vector.load %arg3[%c0_37, %c0_38] : memref<192x1xi32, #tpu.memory_space<vmem>>, vector<192x1xi32>
    %75 = tpu.iota {dimensions = array<i32: 1>} : vector<192x16xi32>
    %76 = vector.broadcast %74 : vector<192x1xi32> to vector<192x16xi32>
    %77 = arith.cmpi eq, %75, %76 : vector<192x16xi32>
    %cst_39 = arith.constant 1.000000e+00 : f32
    %cst_40 = arith.constant 0.000000e+00 : f32
    %78 = vector.broadcast %cst_39 : f32 to vector<192x16xf32>
    %79 = vector.broadcast %cst_40 : f32 to vector<192x16xf32>
    %80 = arith.select %77, %78, %79 : vector<192x16xi1>, vector<192x16xf32>
    %81 = arith.truncf %80 : vector<192x16xf32> to vector<192x16xbf16>
    %82 = arith.truncf %73 : vector<16x16xf32> to vector<16x16xbf16>
    %cst_41 = arith.constant dense<0.000000e+00> : vector<192x16xf32>
    %83 = tpu.matmul %81, %82, %cst_41 {dimension_numbers = #tpu.dot_dimension_numbers<[1], [0], [0], [1], [0, 0, 1, 1], [], []>} : vector<192x16xbf16>, vector<16x16xbf16>, vector<192x16xf32> -> vector<192x16xf32>
    %84 = vector.extract_strided_slice %83 {offsets = [0, 0], sizes = [96, 16], strides = [1, 1]} : vector<192x16xf32> to vector<96x16xf32>
    %85 = vector.extract_strided_slice %83 {offsets = [96, 0], sizes = [96, 16], strides = [1, 1]} : vector<192x16xf32> to vector<96x16xf32>
    %86 = arith.subf %84, %85 : vector<96x16xf32>
    %87 = math.absf %86 : vector<96x16xf32>
    %88 = arith.mulf %84, %85 : vector<96x16xf32>
    %c80 = arith.constant 80 : index
    %c0_42 = arith.constant 0 : index
    %89 = vector.load %arg5[%c80, %c0_42] : memref<208x128xbf16, #tpu.memory_space<vmem>>, vector<16x64xbf16>
    %c96 = arith.constant 96 : index
    %c0_43 = arith.constant 0 : index
    %90 = vector.load %arg5[%c96, %c0_43] : memref<208x128xbf16, #tpu.memory_space<vmem>>, vector<16x64xbf16>
    %c112 = arith.constant 112 : index
    %c0_44 = arith.constant 0 : index
    %91 = vector.load %arg5[%c112, %c0_44] : memref<208x128xbf16, #tpu.memory_space<vmem>>, vector<16x64xbf16>
    %c128 = arith.constant 128 : index
    %c0_45 = arith.constant 0 : index
    %92 = vector.load %arg5[%c128, %c0_45] : memref<208x128xbf16, #tpu.memory_space<vmem>>, vector<16x64xbf16>
    %93 = arith.truncf %84 : vector<96x16xf32> to vector<96x16xbf16>
    %cst_46 = arith.constant dense<0.000000e+00> : vector<96x64xf32>
    %94 = tpu.matmul %93, %89, %cst_46 {dimension_numbers = #tpu.dot_dimension_numbers<[1], [0], [0], [1], [0, 0, 1, 1], [], []>} : vector<96x16xbf16>, vector<16x64xbf16>, vector<96x64xf32> -> vector<96x64xf32>
    %95 = arith.truncf %85 : vector<96x16xf32> to vector<96x16xbf16>
    %cst_47 = arith.constant dense<0.000000e+00> : vector<96x64xf32>
    %96 = tpu.matmul %95, %90, %cst_47 {dimension_numbers = #tpu.dot_dimension_numbers<[1], [0], [0], [1], [0, 0, 1, 1], [], []>} : vector<96x16xbf16>, vector<16x64xbf16>, vector<96x64xf32> -> vector<96x64xf32>
    %97 = arith.addf %94, %96 : vector<96x64xf32>
    %98 = arith.truncf %87 : vector<96x16xf32> to vector<96x16xbf16>
    %cst_48 = arith.constant dense<0.000000e+00> : vector<96x64xf32>
    %99 = tpu.matmul %98, %91, %cst_48 {dimension_numbers = #tpu.dot_dimension_numbers<[1], [0], [0], [1], [0, 0, 1, 1], [], []>} : vector<96x16xbf16>, vector<16x64xbf16>, vector<96x64xf32> -> vector<96x64xf32>
    %100 = arith.addf %97, %99 : vector<96x64xf32>
    %101 = arith.truncf %88 : vector<96x16xf32> to vector<96x16xbf16>
    %cst_49 = arith.constant dense<0.000000e+00> : vector<96x64xf32>
    %102 = tpu.matmul %101, %92, %cst_49 {dimension_numbers = #tpu.dot_dimension_numbers<[1], [0], [0], [1], [0, 0, 1, 1], [], []>} : vector<96x16xbf16>, vector<16x64xbf16>, vector<96x64xf32> -> vector<96x64xf32>
    %103 = arith.addf %100, %102 : vector<96x64xf32>
    %104 = vector.broadcast %9 : vector<1x64xf32> to vector<96x64xf32>
    %105 = arith.addf %103, %104 : vector<96x64xf32>
    %cst_50 = arith.constant 0.000000e+00 : f32
    %106 = vector.broadcast %cst_50 : f32 to vector<96x64xf32>
    %107 = arith.maximumf %105, %106 : vector<96x64xf32>
    %c144 = arith.constant 144 : index
    %c0_51 = arith.constant 0 : index
    %108 = vector.load %arg5[%c144, %c0_51] : memref<208x128xbf16, #tpu.memory_space<vmem>>, vector<64x1xbf16>
    %109 = arith.truncf %107 : vector<96x64xf32> to vector<96x64xbf16>
    %cst_52 = arith.constant dense<0.000000e+00> : vector<96x1xf32>
    %110 = tpu.matmul %109, %108, %cst_52 {dimension_numbers = #tpu.dot_dimension_numbers<[1], [0], [0], [1], [0, 0, 1, 1], [], []>} : vector<96x64xbf16>, vector<64x1xbf16>, vector<96x1xf32> -> vector<96x1xf32>
    %111 = vector.broadcast %10 : vector<1x1xf32> to vector<96x1xf32>
    %112 = arith.addf %110, %111 : vector<96x1xf32>
    %c0_53 = arith.constant 0 : index
    %113 = memref.load %arg8[%c0_53] : memref<4xf32, #tpu.memory_space<smem>>
    %c1_54 = arith.constant 1 : index
    %114 = memref.load %arg8[%c1_54] : memref<4xf32, #tpu.memory_space<smem>>
    %c2_55 = arith.constant 2 : index
    %115 = memref.load %arg8[%c2_55] : memref<4xf32, #tpu.memory_space<smem>>
    %116 = vector.broadcast %113 : f32 to vector<96x1xf32>
    %117 = arith.mulf %112, %116 : vector<96x1xf32>
    %c0_56 = arith.constant 0 : index
    %c0_57 = arith.constant 0 : index
    %118 = vector.load %arg7[%c0_56, %c0_57] : memref<96x1xf32, #tpu.memory_space<vmem>>, vector<96x1xf32>
    %119 = vector.broadcast %114 : f32 to vector<96x1xf32>
    %120 = arith.mulf %119, %118 : vector<96x1xf32>
    %cst_58 = arith.constant 0.000000e+00 : f32
    %121 = vector.broadcast %cst_58 : f32 to vector<96x1xf32>
    %122 = arith.subf %121, %117 : vector<96x1xf32>
    %cst_59 = arith.constant 0.000000e+00 : f32
    %123 = vector.broadcast %cst_59 : f32 to vector<96x1xf32>
    %124 = arith.maximumf %122, %123 : vector<96x1xf32>
    %125 = math.absf %122 : vector<96x1xf32>
    %cst_60 = arith.constant 0.000000e+00 : f32
    %126 = vector.broadcast %cst_60 : f32 to vector<96x1xf32>
    %127 = arith.subf %126, %125 : vector<96x1xf32>
    %128 = math.exp %127 : vector<96x1xf32>
    %cst_61 = arith.constant 1.000000e+00 : f32
    %129 = vector.broadcast %cst_61 : f32 to vector<96x1xf32>
    %130 = arith.addf %129, %128 : vector<96x1xf32>
    %131 = math.log %130 : vector<96x1xf32>
    %132 = arith.addf %124, %131 : vector<96x1xf32>
    %133 = arith.mulf %120, %132 : vector<96x1xf32>
    %cst_62 = arith.constant 1.000000e+00 : f32
    %134 = vector.broadcast %cst_62 : f32 to vector<96x1xf32>
    %135 = arith.subf %134, %118 : vector<96x1xf32>
    %cst_63 = arith.constant 0.000000e+00 : f32
    %136 = vector.broadcast %cst_63 : f32 to vector<96x1xf32>
    %137 = arith.maximumf %117, %136 : vector<96x1xf32>
    %138 = math.absf %117 : vector<96x1xf32>
    %cst_64 = arith.constant 0.000000e+00 : f32
    %139 = vector.broadcast %cst_64 : f32 to vector<96x1xf32>
    %140 = arith.subf %139, %138 : vector<96x1xf32>
    %141 = math.exp %140 : vector<96x1xf32>
    %cst_65 = arith.constant 1.000000e+00 : f32
    %142 = vector.broadcast %cst_65 : f32 to vector<96x1xf32>
    %143 = arith.addf %142, %141 : vector<96x1xf32>
    %144 = math.log %143 : vector<96x1xf32>
    %145 = arith.addf %137, %144 : vector<96x1xf32>
    %146 = arith.mulf %135, %145 : vector<96x1xf32>
    %147 = arith.addf %133, %146 : vector<96x1xf32>
    %cst_66 = arith.constant dense<0.000000e+00> : vector<96xf32>
    %148 = vector.multi_reduction <add>, %147, %cst_66 [1] : vector<96x1xf32> to vector<96xf32>
    %149 = vector.shape_cast %148 : vector<96xf32> to vector<96x1xf32>
    %cst_67 = arith.constant dense<0.000000e+00> : vector<1xf32>
    %150 = vector.multi_reduction <add>, %149, %cst_67 [0] : vector<96x1xf32> to vector<1xf32>
    %151 = vector.shape_cast %150 : vector<1xf32> to vector<1x1xf32>
    %cst_68 = arith.constant 9.600000e+01 : f32
    %152 = vector.broadcast %cst_68 : f32 to vector<1x1xf32>
    %153 = arith.divf %151, %152 : vector<1x1xf32>
    %cst_69 = arith.constant 1.000000e+00 : f32
    %154 = vector.broadcast %cst_69 : f32 to vector<16x16xf32>
    %155 = arith.addf %154, %49 : vector<16x16xf32>
    %156 = arith.mulf %48, %48 : vector<16x16xf32>
    %157 = arith.subf %155, %156 : vector<16x16xf32>
    %158 = math.exp %49 : vector<16x16xf32>
    %159 = arith.subf %157, %158 : vector<16x16xf32>
    %cst_70 = arith.constant dense<0.000000e+00> : vector<16xf32>
    %160 = vector.multi_reduction <add>, %159, %cst_70 [1] : vector<16x16xf32> to vector<16xf32>
    %161 = vector.shape_cast %160 : vector<16xf32> to vector<16x1xf32>
    %cst_71 = arith.constant dense<0.000000e+00> : vector<1xf32>
    %162 = vector.multi_reduction <add>, %161, %cst_71 [0] : vector<16x1xf32> to vector<1xf32>
    %163 = vector.shape_cast %162 : vector<1xf32> to vector<1x1xf32>
    %cst_72 = arith.constant 2.560000e+02 : f32
    %164 = vector.broadcast %cst_72 : f32 to vector<1x1xf32>
    %165 = arith.divf %163, %164 : vector<1x1xf32>
    %cst_73 = arith.constant -5.000000e-01 : f32
    %166 = vector.broadcast %cst_73 : f32 to vector<1x1xf32>
    %167 = arith.mulf %166, %165 : vector<1x1xf32>
    %168 = vector.broadcast %115 : f32 to vector<1x1xf32>
    %169 = arith.mulf %168, %167 : vector<1x1xf32>
    %170 = arith.addf %153, %169 : vector<1x1xf32>
    %171 = tpu.iota {dimensions = array<i32: 1>} : vector<1x128xi32>
    %c0_i32 = arith.constant 0 : i32
    %172 = vector.broadcast %c0_i32 : i32 to vector<1x128xi32>
    %173 = arith.cmpi eq, %171, %172 : vector<1x128xi32>
    %cst_74 = arith.constant 0.000000e+00 : f32
    %174 = vector.shape_cast %170 : vector<1x1xf32> to vector<1x1xf32>
    %175 = vector.broadcast %174 : vector<1x1xf32> to vector<1x128xf32>
    %176 = vector.broadcast %cst_74 : f32 to vector<1x128xf32>
    %177 = arith.select %173, %175, %176 : vector<1x128xi1>, vector<1x128xf32>
    %c1_i32 = arith.constant 1 : i32
    %178 = vector.broadcast %c1_i32 : i32 to vector<1x128xi32>
    %179 = arith.cmpi eq, %171, %178 : vector<1x128xi32>
    %cst_75 = arith.constant 0.000000e+00 : f32
    %180 = vector.shape_cast %153 : vector<1x1xf32> to vector<1x1xf32>
    %181 = vector.broadcast %180 : vector<1x1xf32> to vector<1x128xf32>
    %182 = vector.broadcast %cst_75 : f32 to vector<1x128xf32>
    %183 = arith.select %179, %181, %182 : vector<1x128xi1>, vector<1x128xf32>
    %184 = arith.addf %177, %183 : vector<1x128xf32>
    %c2_i32 = arith.constant 2 : i32
    %185 = vector.broadcast %c2_i32 : i32 to vector<1x128xi32>
    %186 = arith.cmpi eq, %171, %185 : vector<1x128xi32>
    %cst_76 = arith.constant 0.000000e+00 : f32
    %187 = vector.shape_cast %167 : vector<1x1xf32> to vector<1x1xf32>
    %188 = vector.broadcast %187 : vector<1x1xf32> to vector<1x128xf32>
    %189 = vector.broadcast %cst_76 : f32 to vector<1x128xf32>
    %190 = arith.select %186, %188, %189 : vector<1x128xi1>, vector<1x128xf32>
    %191 = arith.addf %184, %190 : vector<1x128xf32>
    %c0_77 = arith.constant 0 : index
    %c0_78 = arith.constant 0 : index
    %192 = vector.load %arg9[%c0_77, %c0_78] : memref<1x128xf32, #tpu.memory_space<vmem>>, vector<1x128xf32>
    tpu.vector_store %arg9[%c0_77, %c0_78], %191 {strides = array<i32>} : memref<1x128xf32, #tpu.memory_space<vmem>>, vector<1x128xf32>,
    return
  }
}

</mosaic_0001>

<llo_original>
// kernel: _graph_vae_forward.1
$region0: #{_graph_vae_forward.1}
  #allocation0 [shape = 'u32[]', space=smem, size = 0x4, offset = 0x4, fixed_abs, tag = 'smem constant byte address 0x4 - core index']
  #allocation1 [shape = 'u32[144,128]{1,0:T(1,128)}', space=vmem, size = 0x12000, scoped, tag = 'internal scratch']
  %s0 = inlined_call_operand.vmem [shape: bf16[16,8], index: 0, kind: input, shape index: {}]
  %s1 = inlined_call_operand.vmem [shape: bf16[16,16], index: 1, kind: input, shape index: {}]
  %s2 = inlined_call_operand.vmem [shape: bf16[16,16], index: 2, kind: input, shape index: {}]
  %s3 = inlined_call_operand.vmem [shape: s32[192,1], index: 3, kind: input, shape index: {}]
  %s4 = inlined_call_operand.vmem [shape: f32[16,16], index: 4, kind: input, shape index: {}]
  %s5 = inlined_call_operand.vmem [shape: bf16[208,128], index: 5, kind: input, shape index: {}]
  %s6 = inlined_call_operand.vmem [shape: f32[8,128], index: 6, kind: input, shape index: {}]
  %s7 = inlined_call_operand.vmem [shape: f32[96,1], index: 7, kind: input, shape index: {}]
  %s8 = inlined_call_operand.vmem [shape: f32[4], index: 8, kind: input, shape index: {}]
  %s9 = inlined_call_operand.vmem [shape: f32[1,128], index: 9, kind: output, shape index: {}]
  %s10 = sld [smem:[#allocation0]]
  $region50: #{_graph_vae_forward.1} parent=0
    _
  %s12 = ssub.s32 1, %s10
  %s13 = scalar_select 0, %s12, %s10
  $region1: #{_graph_vae_forward.1} parent=0
    #allocation2 [shape = 'u8[512]{0}', space=smem, size = 0x200, scoped, tag = 'input window, operand 8, single buffered']
    #allocation3 [shape = 's32[1]{0}', space=sflag, size = 0x4, scoped, tag = 'scoped memory for _graph_vae_forward.1']
    %14 = vsyncpa [#allocation3], 0
    // Predicated region
    $region2: #{_graph_vae_forward.1} parent=1 // pred_check
      _
    $region3: #{_graph_vae_forward.1} parent=1 // pred_check_branch
      %16 = sbr.rel (0) target = $region5
    $region4: #{_graph_vae_forward.1} parent=1 // pred_region
      _
    $region5: #{_graph_vae_forward.1} parent=1 // pred_fallthru
      _
    // Predicated region
    $region6: #{_graph_vae_forward.1} parent=1 // pred_check
      _
    $region7: #{_graph_vae_forward.1} parent=1 // pred_check_branch
      %18 = sbr.rel (0) target = $region9
    $region8: #{_graph_vae_forward.1} parent=1 // pred_region
      _
    $region9: #{_graph_vae_forward.1} parent=1 // pred_fallthru
      _
    // Predicated region
    $region10: #{_graph_vae_forward.1} parent=1 // pred_check
      _
    $region11: #{_graph_vae_forward.1} parent=1 // pred_check_branch
      %20 = sbr.rel (0) target = $region13
    $region12: #{_graph_vae_forward.1} parent=1 // pred_region
      _
    $region13: #{_graph_vae_forward.1} parent=1 // pred_fallthru
      _
    // Predicated region
    $region14: #{_graph_vae_forward.1} parent=1 // pred_check
      _
    $region15: #{_graph_vae_forward.1} parent=1 // pred_check_branch
      %22 = sbr.rel (0) target = $region17
    $region16: #{_graph_vae_forward.1} parent=1 // pred_region
      _
    $region17: #{_graph_vae_forward.1} parent=1 // pred_fallthru
      _
    // Predicated region
    $region18: #{_graph_vae_forward.1} parent=1 // pred_check
      _
    $region19: #{_graph_vae_forward.1} parent=1 // pred_check_branch
      %24 = sbr.rel (0) target = $region21
    $region20: #{_graph_vae_forward.1} parent=1 // pred_region
      _
    $region21: #{_graph_vae_forward.1} parent=1 // pred_fallthru
      _
    // Predicated region
    $region22: #{_graph_vae_forward.1} parent=1 // pred_check
      _
    $region23: #{_graph_vae_forward.1} parent=1 // pred_check_branch
      %26 = sbr.rel (0) target = $region25
    $region24: #{_graph_vae_forward.1} parent=1 // pred_region
      _
    $region25: #{_graph_vae_forward.1} parent=1 // pred_fallthru
      _
    // Predicated region
    $region26: #{_graph_vae_forward.1} parent=1 // pred_check
      _
    $region27: #{_graph_vae_forward.1} parent=1 // pred_check_branch
      %28 = sbr.rel (0) target = $region29
    $region28: #{_graph_vae_forward.1} parent=1 // pred_region
      _
    $region29: #{_graph_vae_forward.1} parent=1 // pred_fallthru
      _
    // Predicated region
    $region30: #{_graph_vae_forward.1} parent=1 // pred_check
      _
    $region31: #{_graph_vae_forward.1} parent=1 // pred_check_branch
      %30 = sbr.rel (0) target = $region33
    $region32: #{_graph_vae_forward.1} parent=1 // pred_region
      _
    $region33: #{_graph_vae_forward.1} parent=1 // pred_fallthru
      _
    // Predicated region
    $region34: #{_graph_vae_forward.1} parent=1 // pred_check
      _
    $region35: #{_graph_vae_forward.1} parent=1 // pred_check_branch
      %32 = sbr.rel (0) target = $region37
    $region36: #{_graph_vae_forward.1} parent=1 // pred_region
      %s34 = ssub.s32 16, 16
      %35 = vsyncadd [#allocation3], %s34
      %s37 = sshll.u32 %s8, 4
      %s38 = int_to_ptr.vmem [resolvable:$true] %s37
      %40 = dma.vmem_to_smem %s38, 16, [#allocation2], [#allocation3]
    $region37: #{_graph_vae_forward.1} parent=1 // pred_fallthru
      _
    // Predicated region
    $region38: #{_graph_vae_forward.1} parent=1 // pred_check
      _
    $region39: #{_graph_vae_forward.1} parent=1 // pred_check_branch
      %42 = sbr.rel (0) target = $region41
    $region40: #{_graph_vae_forward.1} parent=1 // pred_region
      %43 = dma.done [#allocation3], 16
    $region41: #{_graph_vae_forward.1} parent=1 // pred_fallthru
      _
    %44 = sfence
    %v46 = vld [vmem:[%s0] sm:$0xf]
    %v47 = vld [vmem:[%s0 + $0x4] sm:$0xf]
    %v48 = vld [vmem:[%s1] sm:$0xf]
    %v49 = vld [vmem:[%s1 + $0x4] sm:$0xf]
    %v50 = vld [vmem:[%s2] sm:$0xf]
    %v51 = vld [vmem:[%s2 + $0x4] sm:$0xf]
    %v52 = vld [vmem:[%s6] sm:$0x1]
    %v53 = vld [vmem:[%s6 + $0x1] sm:$0x1]
    %v54 = vld [vmem:[%s6 + $0x2] sm:$0x1]
    %v55 = vld [vmem:[%s6 + $0x3] sm:$0x1]
    %v56 = vld [vmem:[%s6 + $0x4] sm:$0x1]
    %v57 = vld [vmem:[%s6 + $0x5] sm:$0x1]
    %v58 = vld [vmem:[%s6 + $0x6] sm:$0x1]
    %v59 = vld [vmem:[%s6 + $0x7] sm:$0x1]
    %v60 = vld [vmem:[%s5] sm:$0xf]
    %v63 = vunpack.c.l.b16 %v46
    %v64 = vunpack.c.l.b16 %v47
    %v65 = vpack.c.b16 %v64, %v63
    %vm66 = vcmask 64512
    %v68 = vsel %vm66, %v65, 0
    %vm70 = vcmask 1043456
    %v72 = vsel %vm70, %v60, 0
    %74 = vmatprep.subr.bf16.mxu0 0
    %75 = vmatpush1.bf16.msra.mxu0 0
    %76 = vmatprep.subr.bf16.mxu0 0
    %77 = vmatpush1.bf16.msra.mxu0 0
    %78 = vmatprep.subr.bf16.mxu0 0
    %79 = vmatpush1.bf16.msra.mxu0 0
    %80 = vmatprep.subr.bf16.mxu0 0
    %81 = vmatpush1.bf16.msra.mxu0 0
    %82 = vmatprep.subr.bf16.mxu0 0
    %83 = vmatpush1.bf16.msra.mxu0 0
    %84 = vmatprep.subr.bf16.mxu0 0
    %85 = vmatpush1.bf16.msra.mxu0 0
    %86 = vmatprep.subr.bf16.mxu0 0
    %87 = vmatpush1.bf16.msra.mxu0 0
    %88 = vmatprep.subr.bf16.mxu0 0
    %89 = vmatpush1.bf16.msra.mxu0 %v72
    %90 = vmatprep.subr.bf16.mxu0 0
    %91 = vmatpush2.bf16.msra.mxu0 0
    %92 = vmatprep.subr.bf16.mxu0 0
    %93 = vmatpush2.bf16.msra.mxu0 0
    %94 = vmatprep.subr.bf16.mxu0 0
    %95 = vmatpush2.bf16.msra.mxu0 0
    %96 = vmatprep.subr.bf16.mxu0 0
    %97 = vmatpush2.bf16.msra.mxu0 0
    %98 = vmatprep.subr.bf16.mxu0 0
    %99 = vmatpush2.bf16.msra.mxu0 0
    %100 = vmatprep.subr.bf16.mxu0 0
    %101 = vmatpush2.bf16.msra.mxu0 0
    %102 = vmatprep.subr.bf16.mxu0 0
    %103 = vmatpush2.bf16.msra.mxu0 0
    %104 = vmatprep.subr.bf16.mxu0 0
    %105 = vmatpush2.bf16.msra.mxu0 0
    %106 = vmatprep.mubr.bf16.mxu0 0
    %107 = vmatmul.mubr.bf16.gmra.mxu0 %v68
    %v108 = vpop.f32.mrf.mxu0
    %v109 = vadd.f32 0.0, %v108
    %v110 = vpop.f32.mrf.mxu0
    %v111 = vpop.f32.mrf.mxu0
    %v112 = vadd.f32 0.0, %v111
    %v113 = vpop.f32.mrf.mxu0
    %114 = vdwg.mxu0
    %v115 = vpack.c.bf16 %v112, %v109
    %v116 = vlaneseq
    %v117 = vshrl.u32 %v116, 7
    %v118 = vsub.s32 0, %v117
    %v119 = vrot.slane %v52, %v118
    %v122 = vunpack.c.l.b16 %v48
    %v123 = vunpack.c.l.b16 %v49
    %v124 = vpack.c.b16 %v123, %v122
    %vm125 = vcmask 130048
    %v127 = vsel %vm125, %v124, 0
    %129 = vmatprep.subr.bf16.mxu0 0
    %130 = vmatpush1.bf16.msra.mxu0 0
    %131 = vmatprep.subr.bf16.mxu0 0
    %132 = vmatpush1.bf16.msra.mxu0 0
    %133 = vmatprep.subr.bf16.mxu0 0
    %134 = vmatpush1.bf16.msra.mxu0 0
    %135 = vmatprep.subr.bf16.mxu0 0
    %136 = vmatpush1.bf16.msra.mxu0 0
    %137 = vmatprep.subr.bf16.mxu0 0
    %138 = vmatpush1.bf16.msra.mxu0 0
    %139 = vmatprep.subr.bf16.mxu0 0
    %140 = vmatpush1.bf16.msra.mxu0 0
    %141 = vmatprep.subr.bf16.mxu0 0
    %142 = vmatpush1.bf16.msra.mxu0 0
    %143 = vmatprep.subr.bf16.mxu0 0
    %144 = vmatpush1.bf16.msra.mxu0 %v115
    %145 = vmatprep.subr.bf16.mxu0 0
    %146 = vmatpush2.bf16.msra.mxu0 0
    %147 = vmatprep.subr.bf16.mxu0 0
    %148 = vmatpush2.bf16.msra.mxu0 0
    %149 = vmatprep.subr.bf16.mxu0 0
    %150 = vmatpush2.bf16.msra.mxu0 0
    %151 = vmatprep.subr.bf16.mxu0 0
    %152 = vmatpush2.bf16.msra.mxu0 0
    %153 = vmatprep.subr.bf16.mxu0 0
    %154 = vmatpush2.bf16.msra.mxu0 0
    %155 = vmatprep.subr.bf16.mxu0 0
    %156 = vmatpush2.bf16.msra.mxu0 0
    %157 = vmatprep.subr.bf16.mxu0 0
    %158 = vmatpush2.bf16.msra.mxu0 0
    %159 = vmatprep.subr.bf16.mxu0 0
    %160 = vmatpush2.bf16.msra.mxu0 0
    %161 = vmatprep.mubr.bf16.mxu0 0
    %162 = vmatmul.mubr.bf16.gmra.mxu0 %v127
    %v163 = vpop.f32.mrf.mxu0
    %v164 = vadd.f32 %v119, %v163
    %v165 = vpop.f32.mrf.mxu0
    %v166 = vpop.f32.mrf.mxu0
    %v167 = vadd.f32 %v119, %v166
    %v168 = vpop.f32.mrf.mxu0
    %169 = vdwg.mxu0
    %vm170 = vcmask 261120
    %v171 = vsel %vm170, %v164, 0.0
    %172 = vadd.xlane.f32.xlu0 %v171
    %v173 = vpop.xlane.xlu0 %172
    %v174 = vsel %vm170, %v167, 0.0
    %175 = vadd.xlane.f32.xlu0 %v174
    %v176 = vpop.xlane.xlu0 %175
    %v177 = vrcp.pop 32.0
    %v178 = vmul.f32 %v173, %v177
    %v179 = vmul.f32 %v176, %v177
    %v180 = vsub.f32 %v164, %v178
    %v181 = vsub.f32 %v167, %v179
    %v182 = vmul.f32 %v180, %v180
    %v183 = vmul.f32 %v181, %v181
    %v184 = vsel %vm170, %v182, 0.0
    %185 = vadd.xlane.f32.xlu0 %v184
    %v186 = vpop.xlane.xlu0 %185
    %v187 = vsel %vm170, %v183, 0.0
    %188 = vadd.xlane.f32.xlu0 %v187
    %v189 = vpop.xlane.xlu0 %188
    %v190 = vmul.f32 %v186, %v177
    %v191 = vmul.f32 %v189, %v177
    %v192 = vadd.f32 %v190, 1e-05
    %v193 = vadd.f32 %v191, 1e-05
    %v194 = vrsqrt.pop %v192
    %v195 = vrsqrt.pop %v193
    %v196 = vmul.f32 %v180, %v194
    %v197 = vmul.f32 %v181, %v195
    %v198 = vlaneseq
    %v199 = vshrl.u32 %v198, 7
    %v200 = vsub.s32 0, %v199
    %v201 = vrot.slane %v53, %v200
    %v202 = vmul.f32 %v196, %v201
    %v203 = vmul.f32 %v197, %v201
    %v204 = vlaneseq
    %v205 = vshrl.u32 %v204, 7
    %v206 = vsub.s32 0, %v205
    %v207 = vrot.slane %v54, %v206
    %v208 = vadd.f32 %v202, %v207
    %v209 = vadd.f32 %v203, %v207
    %v210 = vmax.f32 %v208, 0.0
    %v211 = vmax.f32 %v209, 0.0
    %v212 = vld [vmem:[%s5 + $0x8] sm:$0xf]
    %v213 = vld [vmem:[%s5 + $0xc] sm:$0xf]
    %v214 = vld [vmem:[%s5 + $0x10] sm:$0xf]
    %v215 = vld [vmem:[%s5 + $0x14] sm:$0xf]
    %v216 = vpack.c.bf16 %v211, %v210
    %v221 = vunpack.c.l.b16 %v212
    %v222 = vunpack.c.l.b16 %v213
    %v223 = vunpack.c.l.b16 %v214
    %v224 = vunpack.c.l.b16 %v215
    %v225 = vpack.c.b16 %v222, %v221
    %v226 = vpack.c.b16 %v224, %v223
    %v230 = vsel %vm170, %v216, 0
    %232 = vmatprep.subr.bf16.mxu0 0
    %233 = vmatpush1.bf16.msra.mxu0 0
    %234 = vmatprep.subr.bf16.mxu0 0
    %235 = vmatpush1.bf16.msra.mxu0 0
    %236 = vmatprep.subr.bf16.mxu0 0
    %237 = vmatpush1.bf16.msra.mxu0 0
    %238 = vmatprep.subr.bf16.mxu0 0
    %239 = vmatpush1.bf16.msra.mxu0 0
    %240 = vmatprep.subr.bf16.mxu0 0
    %241 = vmatpush1.bf16.msra.mxu0 0
    %242 = vmatprep.subr.bf16.mxu0 0
    %243 = vmatpush1.bf16.msra.mxu0 0
    %244 = vmatprep.subr.bf16.mxu0 0
    %245 = vmatpush1.bf16.msra.mxu0 %v226
    %246 = vmatprep.subr.bf16.mxu0 0
    %247 = vmatpush1.bf16.msra.mxu0 %v225
    %248 = vmatprep.subr.bf16.mxu0 0
    %249 = vmatpush2.bf16.msra.mxu0 0
    %250 = vmatprep.subr.bf16.mxu0 0
    %251 = vmatpush2.bf16.msra.mxu0 0
    %252 = vmatprep.subr.bf16.mxu0 0
    %253 = vmatpush2.bf16.msra.mxu0 0
    %254 = vmatprep.subr.bf16.mxu0 0
    %255 = vmatpush2.bf16.msra.mxu0 0
    %256 = vmatprep.subr.bf16.mxu0 0
    %257 = vmatpush2.bf16.msra.mxu0 0
    %258 = vmatprep.subr.bf16.mxu0 0
    %259 = vmatpush2.bf16.msra.mxu0 0
    %260 = vmatprep.subr.bf16.mxu0 0
    %261 = vmatpush2.bf16.msra.mxu0 0
    %262 = vmatprep.subr.bf16.mxu0 0
    %263 = vmatpush2.bf16.msra.mxu0 0
    %264 = vmatprep.mubr.bf16.mxu0 0
    %265 = vmatmul.mubr.bf16.gmra.mxu0 %v230
    %v266 = vpop.f32.mrf.mxu0
    %v267 = vadd.f32 0.0, %v266
    %v268 = vpop.f32.mrf.mxu0
    %v269 = vpop.f32.mrf.mxu0
    %v270 = vadd.f32 0.0, %v269
    %v271 = vpop.f32.mrf.mxu0
    %272 = vdwg.mxu0
    %v273 = vpack.c.bf16 %v270, %v267
    %v274 = vlaneseq
    %v275 = vshrl.u32 %v274, 7
    %v276 = vsub.s32 0, %v275
    %v277 = vrot.slane %v55, %v276
    %278 = vmatprep.subr.bf16.mxu0 0
    %279 = vmatpush1.bf16.msra.mxu0 0
    %280 = vmatprep.subr.bf16.mxu0 0
    %281 = vmatpush1.bf16.msra.mxu0 0
    %282 = vmatprep.subr.bf16.mxu0 0
    %283 = vmatpush1.bf16.msra.mxu0 0
    %284 = vmatprep.subr.bf16.mxu0 0
    %285 = vmatpush1.bf16.msra.mxu0 0
    %286 = vmatprep.subr.bf16.mxu0 0
    %287 = vmatpush1.bf16.msra.mxu0 0
    %288 = vmatprep.subr.bf16.mxu0 0
    %289 = vmatpush1.bf16.msra.mxu0 0
    %290 = vmatprep.subr.bf16.mxu0 0
    %291 = vmatpush1.bf16.msra.mxu0 0
    %292 = vmatprep.subr.bf16.mxu0 0
    %293 = vmatpush1.bf16.msra.mxu0 %v273
    %294 = vmatprep.subr.bf16.mxu0 0
    %295 = vmatpush2.bf16.msra.mxu0 0
    %296 = vmatprep.subr.bf16.mxu0 0
    %297 = vmatpush2.bf16.msra.mxu0 0
    %298 = vmatprep.subr.bf16.mxu0 0
    %299 = vmatpush2.bf16.msra.mxu0 0
    %300 = vmatprep.subr.bf16.mxu0 0
    %301 = vmatpush2.bf16.msra.mxu0 0
    %302 = vmatprep.subr.bf16.mxu0 0
    %303 = vmatpush2.bf16.msra.mxu0 0
    %304 = vmatprep.subr.bf16.mxu0 0
    %305 = vmatpush2.bf16.msra.mxu0 0
    %306 = vmatprep.subr.bf16.mxu0 0
    %307 = vmatpush2.bf16.msra.mxu0 0
    %308 = vmatprep.subr.bf16.mxu0 0
    %309 = vmatpush2.bf16.msra.mxu0 0
    %310 = vmatprep.mubr.bf16.mxu0 0
    %311 = vmatmul.mubr.bf16.gmra.mxu0 %v127
    %v312 = vpop.f32.mrf.mxu0
    %v313 = vadd.f32 %v277, %v312
    %v314 = vpop.f32.mrf.mxu0
    %v315 = vpop.f32.mrf.mxu0
    %v316 = vadd.f32 %v277, %v315
    %v317 = vpop.f32.mrf.mxu0
    %318 = vdwg.mxu0
    %v319 = vld [vmem:[%s4] sm:$0xff]
    %v320 = vld [vmem:[%s4 + $0x8] sm:$0xff]
    %v321 = vmul.f32 %v313, 0.5
    %v322 = vmul.f32 %v316, 0.5
    %v323 = vmul.f32 %v321, 1.442695
    %v324 = vpow.pop %v323
    %v325 = vmul.f32 %v322, 1.442695
    %v326 = vpow.pop %v325
    %329 = vrot.lane.b32.xlu0 %v324, 112
    %v330 = vpop.permute.xlu0 %329
    %331 = vrot.lane.b32.xlu0 %v326, 112
    %v332 = vpop.permute.xlu0 %331
    %v335 = vmul.f32 %v319, %v330
    %v336 = vmul.f32 %v320, %v332
    %v337 = vadd.f32 %v313, %v335
    %v338 = vadd.f32 %v316, %v336
    %v339 = vld [vmem:[%s5 + $0x18] sm:$0xf]
    %v340 = vld [vmem:[%s5 + $0x1c] sm:$0xf]
    %v341 = vld [vmem:[%s5 + $0x20] sm:$0xf]
    %v342 = vld [vmem:[%s5 + $0x24] sm:$0xf]
    %v343 = vpack.c.bf16 %v338, %v337
    %v346 = vunpack.c.l.b16 %v339
    %v347 = vunpack.c.l.b16 %v340
    %v348 = vpack.c.b16 %v347, %v346
    %v351 = vsel %vm125, %v343, 0
    %353 = vmatprep.subr.bf16.mxu0 0
    %354 = vmatpush1.bf16.msra.mxu0 0
    %355 = vmatprep.subr.bf16.mxu0 0
    %356 = vmatpush1.bf16.msra.mxu0 0
    %357 = vmatprep.subr.bf16.mxu0 0
    %358 = vmatpush1.bf16.msra.mxu0 0
    %359 = vmatprep.subr.bf16.mxu0 0
    %360 = vmatpush1.bf16.msra.mxu0 0
    %361 = vmatprep.subr.bf16.mxu0 0
    %362 = vmatpush1.bf16.msra.mxu0 0
    %363 = vmatprep.subr.bf16.mxu0 0
    %364 = vmatpush1.bf16.msra.mxu0 0
    %365 = vmatprep.subr.bf16.mxu0 0
    %366 = vmatpush1.bf16.msra.mxu0 0
    %367 = vmatprep.subr.bf16.mxu0 0
    %368 = vmatpush1.bf16.msra.mxu0 %v348
    %369 = vmatprep.subr.bf16.mxu0 0
    %370 = vmatpush2.bf16.msra.mxu0 0
    %371 = vmatprep.subr.bf16.mxu0 0
    %372 = vmatpush2.bf16.msra.mxu0 0
    %373 = vmatprep.subr.bf16.mxu0 0
    %374 = vmatpush2.bf16.msra.mxu0 0
    %375 = vmatprep.subr.bf16.mxu0 0
    %376 = vmatpush2.bf16.msra.mxu0 0
    %377 = vmatprep.subr.bf16.mxu0 0
    %378 = vmatpush2.bf16.msra.mxu0 0
    %379 = vmatprep.subr.bf16.mxu0 0
    %380 = vmatpush2.bf16.msra.mxu0 0
    %381 = vmatprep.subr.bf16.mxu0 0
    %382 = vmatpush2.bf16.msra.mxu0 0
    %383 = vmatprep.subr.bf16.mxu0 0
    %384 = vmatpush2.bf16.msra.mxu0 0
    %385 = vmatprep.mubr.bf16.mxu0 0
    %386 = vmatmul.mubr.bf16.gmra.mxu0 %v351
    %v387 = vpop.f32.mrf.mxu0
    %v388 = vadd.f32 0.0, %v387
    %v389 = vpop.f32.mrf.mxu0
    %v390 = vpop.f32.mrf.mxu0
    %v391 = vadd.f32 0.0, %v390
    %v392 = vpop.f32.mrf.mxu0
    %393 = vdwg.mxu0
    %v394 = vpack.c.bf16 %v391, %v388
    %v395 = vlaneseq
    %v396 = vshrl.u32 %v395, 7
    %v397 = vsub.s32 0, %v396
    %v398 = vrot.slane %v56, %v397
    %v401 = vunpack.c.l.b16 %v50
    %v402 = vunpack.c.l.b16 %v51
    %v403 = vpack.c.b16 %v402, %v401
    %v405 = vsel %vm125, %v403, 0
    %407 = vmatprep.subr.bf16.mxu0 0
    %408 = vmatpush1.bf16.msra.mxu0 0
    %409 = vmatprep.subr.bf16.mxu0 0
    %410 = vmatpush1.bf16.msra.mxu0 0
    %411 = vmatprep.subr.bf16.mxu0 0
    %412 = vmatpush1.bf16.msra.mxu0 0
    %413 = vmatprep.subr.bf16.mxu0 0
    %414 = vmatpush1.bf16.msra.mxu0 0
    %415 = vmatprep.subr.bf16.mxu0 0
    %416 = vmatpush1.bf16.msra.mxu0 0
    %417 = vmatprep.subr.bf16.mxu0 0
    %418 = vmatpush1.bf16.msra.mxu0 0
    %419 = vmatprep.subr.bf16.mxu0 0
    %420 = vmatpush1.bf16.msra.mxu0 0
    %421 = vmatprep.subr.bf16.mxu0 0
    %422 = vmatpush1.bf16.msra.mxu0 %v394
    %423 = vmatprep.subr.bf16.mxu0 0
    %424 = vmatpush2.bf16.msra.mxu0 0
    %425 = vmatprep.subr.bf16.mxu0 0
    %426 = vmatpush2.bf16.msra.mxu0 0
    %427 = vmatprep.subr.bf16.mxu0 0
    %428 = vmatpush2.bf16.msra.mxu0 0
    %429 = vmatprep.subr.bf16.mxu0 0
    %430 = vmatpush2.bf16.msra.mxu0 0
    %431 = vmatprep.subr.bf16.mxu0 0
    %432 = vmatpush2.bf16.msra.mxu0 0
    %433 = vmatprep.subr.bf16.mxu0 0
    %434 = vmatpush2.bf16.msra.mxu0 0
    %435 = vmatprep.subr.bf16.mxu0 0
    %436 = vmatpush2.bf16.msra.mxu0 0
    %437 = vmatprep.subr.bf16.mxu0 0
    %438 = vmatpush2.bf16.msra.mxu0 0
    %439 = vmatprep.mubr.bf16.mxu0 0
    %440 = vmatmul.mubr.bf16.gmra.mxu0 %v405
    %v441 = vpop.f32.mrf.mxu0
    %v442 = vadd.f32 %v398, %v441
    %v443 = vpop.f32.mrf.mxu0
    %v444 = vpop.f32.mrf.mxu0
    %v445 = vadd.f32 %v398, %v444
    %v446 = vpop.f32.mrf.mxu0
    %447 = vdwg.mxu0
    %v448 = vmax.f32 %v442, 0.0
    %v449 = vmax.f32 %v445, 0.0
    %v450 = vpack.c.bf16 %v449, %v448
    %v453 = vunpack.c.l.b16 %v341
    %v454 = vunpack.c.l.b16 %v342
    %v455 = vpack.c.b16 %v454, %v453
    %v458 = vsel %vm125, %v450, 0
    %460 = vmatprep.subr.bf16.mxu0 0
    %461 = vmatpush1.bf16.msra.mxu0 0
    %462 = vmatprep.subr.bf16.mxu0 0
    %463 = vmatpush1.bf16.msra.mxu0 0
    %464 = vmatprep.subr.bf16.mxu0 0
    %465 = vmatpush1.bf16.msra.mxu0 0
    %466 = vmatprep.subr.bf16.mxu0 0
    %467 = vmatpush1.bf16.msra.mxu0 0
    %468 = vmatprep.subr.bf16.mxu0 0
    %469 = vmatpush1.bf16.msra.mxu0 0
    %470 = vmatprep.subr.bf16.mxu0 0
    %471 = vmatpush1.bf16.msra.mxu0 0
    %472 = vmatprep.subr.bf16.mxu0 0
    %473 = vmatpush1.bf16.msra.mxu0 0
    %474 = vmatprep.subr.bf16.mxu0 0
    %475 = vmatpush1.bf16.msra.mxu0 %v455
    %476 = vmatprep.subr.bf16.mxu0 0
    %477 = vmatpush2.bf16.msra.mxu0 0
    %478 = vmatprep.subr.bf16.mxu0 0
    %479 = vmatpush2.bf16.msra.mxu0 0
    %480 = vmatprep.subr.bf16.mxu0 0
    %481 = vmatpush2.bf16.msra.mxu0 0
    %482 = vmatprep.subr.bf16.mxu0 0
    %483 = vmatpush2.bf16.msra.mxu0 0
    %484 = vmatprep.subr.bf16.mxu0 0
    %485 = vmatpush2.bf16.msra.mxu0 0
    %486 = vmatprep.subr.bf16.mxu0 0
    %487 = vmatpush2.bf16.msra.mxu0 0
    %488 = vmatprep.subr.bf16.mxu0 0
    %489 = vmatpush2.bf16.msra.mxu0 0
    %490 = vmatprep.subr.bf16.mxu0 0
    %491 = vmatpush2.bf16.msra.mxu0 0
    %492 = vmatprep.mubr.bf16.mxu0 0
    %493 = vmatmul.mubr.bf16.gmra.mxu0 %v458
    %v494 = vpop.f32.mrf.mxu0
    %v495 = vadd.f32 0.0, %v494
    %v496 = vpop.f32.mrf.mxu0
    %v497 = vpop.f32.mrf.mxu0
    %v498 = vadd.f32 0.0, %v497
    %v499 = vpop.f32.mrf.mxu0
    %500 = vdwg.mxu0
    %v501 = vpack.c.bf16 %v498, %v495
    %v502 = vlaneseq
    %v503 = vshrl.u32 %v502, 7
    %v504 = vsub.s32 0, %v503
    %v505 = vrot.slane %v57, %v504
    %506 = vmatprep.subr.bf16.mxu0 0
    %507 = vmatpush1.bf16.msra.mxu0 0
    %508 = vmatprep.subr.bf16.mxu0 0
    %509 = vmatpush1.bf16.msra.mxu0 0
    %510 = vmatprep.subr.bf16.mxu0 0
    %511 = vmatpush1.bf16.msra.mxu0 0
    %512 = vmatprep.subr.bf16.mxu0 0
    %513 = vmatpush1.bf16.msra.mxu0 0
    %514 = vmatprep.subr.bf16.mxu0 0
    %515 = vmatpush1.bf16.msra.mxu0 0
    %516 = vmatprep.subr.bf16.mxu0 0
    %517 = vmatpush1.bf16.msra.mxu0 0
    %518 = vmatprep.subr.bf16.mxu0 0
    %519 = vmatpush1.bf16.msra.mxu0 0
    %520 = vmatprep.subr.bf16.mxu0 0
    %521 = vmatpush1.bf16.msra.mxu0 %v501
    %522 = vmatprep.subr.bf16.mxu0 0
    %523 = vmatpush2.bf16.msra.mxu0 0
    %524 = vmatprep.subr.bf16.mxu0 0
    %525 = vmatpush2.bf16.msra.mxu0 0
    %526 = vmatprep.subr.bf16.mxu0 0
    %527 = vmatpush2.bf16.msra.mxu0 0
    %528 = vmatprep.subr.bf16.mxu0 0
    %529 = vmatpush2.bf16.msra.mxu0 0
    %530 = vmatprep.subr.bf16.mxu0 0
    %531 = vmatpush2.bf16.msra.mxu0 0
    %532 = vmatprep.subr.bf16.mxu0 0
    %533 = vmatpush2.bf16.msra.mxu0 0
    %534 = vmatprep.subr.bf16.mxu0 0
    %535 = vmatpush2.bf16.msra.mxu0 0
    %536 = vmatprep.subr.bf16.mxu0 0
    %537 = vmatpush2.bf16.msra.mxu0 0
    %538 = vmatprep.mubr.bf16.mxu0 0
    %539 = vmatmul.mubr.bf16.gmra.mxu0 %v405
    %v540 = vpop.f32.mrf.mxu0
    %v541 = vadd.f32 %v505, %v540
    %v542 = vpop.f32.mrf.mxu0
    %v543 = vpop.f32.mrf.mxu0
    %v544 = vadd.f32 %v505, %v543
    %v545 = vpop.f32.mrf.mxu0
    %546 = vdwg.mxu0
    %v547 = vmax.f32 %v541, 0.0
    %v548 = vmax.f32 %v544, 0.0
    %v549 = vld [vmem:[%s3] sm:$0xff]
    %v550 = vld [vmem:[%s3 + $0x8] sm:$0xff]
    %v551 = vld [vmem:[%s3 + $0x10] sm:$0xff]
    %v552 = vld [vmem:[%s3 + $0x18] sm:$0xff]
    %v553 = vld [vmem:[%s3 + $0x20] sm:$0xff]
    %v554 = vld [vmem:[%s3 + $0x28] sm:$0xff]
    %v555 = vld [vmem:[%s3 + $0x30] sm:$0xff]
    %v556 = vld [vmem:[%s3 + $0x38] sm:$0xff]
    %v557 = vld [vmem:[%s3 + $0x40] sm:$0xff]
    %v558 = vld [vmem:[%s3 + $0x48] sm:$0xff]
    %v559 = vld [vmem:[%s3 + $0x50] sm:$0xff]
    %v560 = vld [vmem:[%s3 + $0x58] sm:$0xff]
    %v561 = vld [vmem:[%s3 + $0x60] sm:$0xff]
    %v562 = vld [vmem:[%s3 + $0x68] sm:$0xff]
    %v563 = vld [vmem:[%s3 + $0x70] sm:$0xff]
    %v564 = vld [vmem:[%s3 + $0x78] sm:$0xff]
    %v565 = vld [vmem:[%s3 + $0x80] sm:$0xff]
    %v566 = vld [vmem:[%s3 + $0x88] sm:$0xff]
    %v567 = vld [vmem:[%s3 + $0x90] sm:$0xff]
    %v568 = vld [vmem:[%s3 + $0x98] sm:$0xff]
    %v569 = vld [vmem:[%s3 + $0xa0] sm:$0xff]
    %v570 = vld [vmem:[%s3 + $0xa8] sm:$0xff]
    %v571 = vld [vmem:[%s3 + $0xb0] sm:$0xff]
    %v572 = vld [vmem:[%s3 + $0xb8] sm:$0xff]
    %v573 = vlaneseq
    %v574 = vand.u32 %v573, 127
    %575 = vset.pattern.permute.xlu0 0
    %576 = vperm.xlu0 %575, %v549
    %v577 = vpop.permute.xlu0 %576
    %578 = vset.pattern.permute.xlu0 0
    %579 = vperm.xlu0 %578, %v550
    %v580 = vpop.permute.xlu0 %579
    %581 = vset.pattern.permute.xlu0 0
    %582 = vperm.xlu0 %581, %v551
    %v583 = vpop.permute.xlu0 %582
    %584 = vset.pattern.permute.xlu0 0
    %585 = vperm.xlu0 %584, %v552
    %v586 = vpop.permute.xlu0 %585
    %587 = vset.pattern.permute.xlu0 0
    %588 = vperm.xlu0 %587, %v553
    %v589 = vpop.permute.xlu0 %588
    %590 = vset.pattern.permute.xlu0 0
    %591 = vperm.xlu0 %590, %v554
    %v592 = vpop.permute.xlu0 %591
    %593 = vset.pattern.permute.xlu0 0
    %594 = vperm.xlu0 %593, %v555
    %v595 = vpop.permute.xlu0 %594
    %596 = vset.pattern.permute.xlu0 0
    %597 = vperm.xlu0 %596, %v556
    %v598 = vpop.permute.xlu0 %597
    %599 = vset.pattern.permute.xlu0 0
    %600 = vperm.xlu0 %599, %v557
    %v601 = vpop.permute.xlu0 %600
    %602 = vset.pattern.permute.xlu0 0
    %603 = vperm.xlu0 %602, %v558
    %v604 = vpop.permute.xlu0 %603
    %605 = vset.pattern.permute.xlu0 0
    %606 = vperm.xlu0 %605, %v559
    %v607 = vpop.permute.xlu0 %606
    %608 = vset.pattern.permute.xlu0 0
    %609 = vperm.xlu0 %608, %v560
    %v610 = vpop.permute.xlu0 %609
    %611 = vset.pattern.permute.xlu0 0
    %612 = vperm.xlu0 %611, %v561
    %v613 = vpop.permute.xlu0 %612
    %614 = vset.pattern.permute.xlu0 0
    %615 = vperm.xlu0 %614, %v562
    %v616 = vpop.permute.xlu0 %615
    %617 = vset.pattern.permute.xlu0 0
    %618 = vperm.xlu0 %617, %v563
    %v619 = vpop.permute.xlu0 %618
    %620 = vset.pattern.permute.xlu0 0
    %621 = vperm.xlu0 %620, %v564
    %v622 = vpop.permute.xlu0 %621
    %623 = vset.pattern.permute.xlu0 0
    %624 = vperm.xlu0 %623, %v565
    %v625 = vpop.permute.xlu0 %624
    %626 = vset.pattern.permute.xlu0 0
    %627 = vperm.xlu0 %626, %v566
    %v628 = vpop.permute.xlu0 %627
    %629 = vset.pattern.permute.xlu0 0
    %630 = vperm.xlu0 %629, %v567
    %v631 = vpop.permute.xlu0 %630
    %632 = vset.pattern.permute.xlu0 0
    %633 = vperm.xlu0 %632, %v568
    %v634 = vpop.permute.xlu0 %633
    %635 = vset.pattern.permute.xlu0 0
    %636 = vperm.xlu0 %635, %v569
    %v637 = vpop.permute.xlu0 %636
    %638 = vset.pattern.permute.xlu0 0
    %639 = vperm.xlu0 %638, %v570
    %v640 = vpop.permute.xlu0 %639
    %641 = vset.pattern.permute.xlu0 0
    %642 = vperm.xlu0 %641, %v571
    %v643 = vpop.permute.xlu0 %642
    %644 = vset.pattern.permute.xlu0 0
    %645 = vperm.xlu0 %644, %v572
    %v646 = vpop.permute.xlu0 %645
    %vm647 = vcmp.eq.s32.totalorder %v574, %v577
    %vm648 = vcmp.eq.s32.totalorder %v574, %v580
    %vm649 = vcmp.eq.s32.totalorder %v574, %v583
    %vm650 = vcmp.eq.s32.totalorder %v574, %v586
    %vm651 = vcmp.eq.s32.totalorder %v574, %v589
    %vm652 = vcmp.eq.s32.totalorder %v574, %v592
    %vm653 = vcmp.eq.s32.totalorder %v574, %v595
    %vm654 = vcmp.eq.s32.totalorder %v574, %v598
    %vm655 = vcmp.eq.s32.totalorder %v574, %v601
    %vm656 = vcmp.eq.s32.totalorder %v574, %v604
    %vm657 = vcmp.eq.s32.totalorder %v574, %v607
    %vm658 = vcmp.eq.s32.totalorder %v574, %v610
    %vm659 = vcmp.eq.s32.totalorder %v574, %v613
    %vm660 = vcmp.eq.s32.totalorder %v574, %v616
    %vm661 = vcmp.eq.s32.totalorder %v574, %v619
    %vm662 = vcmp.eq.s32.totalorder %v574, %v622
    %vm663 = vcmp.eq.s32.totalorder %v574, %v625
    %vm664 = vcmp.eq.s32.totalorder %v574, %v628
    %vm665 = vcmp.eq.s32.totalorder %v574, %v631
    %vm666 = vcmp.eq.s32.totalorder %v574, %v634
    %vm667 = vcmp.eq.s32.totalorder %v574, %v637
    %vm668 = vcmp.eq.s32.totalorder %v574, %v640
    %vm669 = vcmp.eq.s32.totalorder %v574, %v643
    %vm670 = vcmp.eq.s32.totalorder %v574, %v646
    %v671 = vsel %vm647, 1.0, 0.0
    %v672 = vsel %vm648, 1.0, 0.0
    %v673 = vsel %vm649, 1.0, 0.0
    %v674 = vsel %vm650, 1.0, 0.0
    %v675 = vsel %vm651, 1.0, 0.0
    %v676 = vsel %vm652, 1.0, 0.0
    %v677 = vsel %vm653, 1.0, 0.0
    %v678 = vsel %vm654, 1.0, 0.0
    %v679 = vsel %vm655, 1.0, 0.0
    %v680 = vsel %vm656, 1.0, 0.0
    %v681 = vsel %vm657, 1.0, 0.0
    %v682 = vsel %vm658, 1.0, 0.0
    %v683 = vsel %vm659, 1.0, 0.0
    %v684 = vsel %vm660, 1.0, 0.0
    %v685 = vsel %vm661, 1.0, 0.0
    %v686 = vsel %vm662, 1.0, 0.0
    %v687 = vsel %vm663, 1.0, 0.0
    %v688 = vsel %vm664, 1.0, 0.0
    %v689 = vsel %vm665, 1.0, 0.0
    %v690 = vsel %vm666, 1.0, 0.0
    %v691 = vsel %vm667, 1.0, 0.0
    %v692 = vsel %vm668, 1.0, 0.0
    %v693 = vsel %vm669, 1.0, 0.0
    %v694 = vsel %vm670, 1.0, 0.0
    %v695 = vpack.c.bf16 %v672, %v671
    %v696 = vpack.c.bf16 %v674, %v673
    %v697 = vpack.c.bf16 %v676, %v675
    %v698 = vpack.c.bf16 %v678, %v677
    %v699 = vpack.c.bf16 %v680, %v679
    %v700 = vpack.c.bf16 %v682, %v681
    %v701 = vpack.c.bf16 %v684, %v683
    %v702 = vpack.c.bf16 %v686, %v685
    %v703 = vpack.c.bf16 %v688, %v687
    %v704 = vpack.c.bf16 %v690, %v689
    %v705 = vpack.c.bf16 %v692, %v691
    %v706 = vpack.c.bf16 %v694, %v693
    %v707 = vpack.c.bf16 %v548, %v547
    %v709 = vsel %vm125, %v695, 0
    %v712 = vsel %vm125, %v696, 0
    %v715 = vsel %vm125, %v697, 0
    %v718 = vsel %vm125, %v698, 0
    %v721 = vsel %vm125, %v699, 0
    %v724 = vsel %vm125, %v700, 0
    %v727 = vsel %vm125, %v701, 0
    %v730 = vsel %vm125, %v702, 0
    %v733 = vsel %vm125, %v703, 0
    %v736 = vsel %vm125, %v704, 0
    %v739 = vsel %vm125, %v705, 0
    %v742 = vsel %vm125, %v706, 0
    %744 = vmatprep.subr.bf16.mxu0 0
    %745 = vmatpush1.bf16.msra.mxu0 0
    %746 = vmatprep.subr.bf16.mxu0 0
    %747 = vmatpush1.bf16.msra.mxu0 0
    %748 = vmatprep.subr.bf16.mxu0 0
    %749 = vmatpush1.bf16.msra.mxu0 0
    %750 = vmatprep.subr.bf16.mxu0 0
    %751 = vmatpush1.bf16.msra.mxu0 0
    %752 = vmatprep.subr.bf16.mxu0 0
    %753 = vmatpush1.bf16.msra.mxu0 0
    %754 = vmatprep.subr.bf16.mxu0 0
    %755 = vmatpush1.bf16.msra.mxu0 0
    %756 = vmatprep.subr.bf16.mxu0 0
    %757 = vmatpush1.bf16.msra.mxu0 0
    %758 = vmatprep.subr.bf16.mxu0 0
    %759 = vmatpush1.bf16.msra.mxu0 %v707
    %760 = vmatprep.subr.bf16.mxu0 0
    %761 = vmatpush2.bf16.msra.mxu0 0
    %762 = vmatprep.subr.bf16.mxu0 0
    %763 = vmatpush2.bf16.msra.mxu0 0
    %764 = vmatprep.subr.bf16.mxu0 0
    %765 = vmatpush2.bf16.msra.mxu0 0
    %766 = vmatprep.subr.bf16.mxu0 0
    %767 = vmatpush2.bf16.msra.mxu0 0
    %768 = vmatprep.subr.bf16.mxu0 0
    %769 = vmatpush2.bf16.msra.mxu0 0
    %770 = vmatprep.subr.bf16.mxu0 0
    %771 = vmatpush2.bf16.msra.mxu0 0
    %772 = vmatprep.subr.bf16.mxu0 0
    %773 = vmatpush2.bf16.msra.mxu0 0
    %774 = vmatprep.subr.bf16.mxu0 0
    %775 = vmatpush2.bf16.msra.mxu0 0
    %776 = vmatprep.mubr.bf16.mxu0 0
    %777 = vmatmul.mubr.bf16.gmra.mxu0 %v709
    %v778 = vpop.f32.mrf.mxu0
    %v779 = vadd.f32 0.0, %v778
    %v780 = vpop.f32.mrf.mxu0
    %v781 = vpop.f32.mrf.mxu0
    %v782 = vadd.f32 0.0, %v781
    %v783 = vpop.f32.mrf.mxu0
    %784 = vmatprep.mubr.bf16.mxu0 0
    %785 = vmatmul.mubr.bf16.gmra.mxu0 %v712
    %v786 = vpop.f32.mrf.mxu0
    %v787 = vadd.f32 0.0, %v786
    %v788 = vpop.f32.mrf.mxu0
    %v789 = vpop.f32.mrf.mxu0
    %v790 = vadd.f32 0.0, %v789
    %v791 = vpop.f32.mrf.mxu0
    %792 = vmatprep.mubr.bf16.mxu0 0
    %793 = vmatmul.mubr.bf16.gmra.mxu0 %v715
    %v794 = vpop.f32.mrf.mxu0
    %v795 = vadd.f32 0.0, %v794
    %v796 = vpop.f32.mrf.mxu0
    %v797 = vpop.f32.mrf.mxu0
    %v798 = vadd.f32 0.0, %v797
    %v799 = vpop.f32.mrf.mxu0
    %800 = vmatprep.mubr.bf16.mxu0 0
    %801 = vmatmul.mubr.bf16.gmra.mxu0 %v718
    %v802 = vpop.f32.mrf.mxu0
    %v803 = vadd.f32 0.0, %v802
    %v804 = vpop.f32.mrf.mxu0
    %v805 = vpop.f32.mrf.mxu0
    %v806 = vadd.f32 0.0, %v805
    %v807 = vpop.f32.mrf.mxu0
    %808 = vmatprep.mubr.bf16.mxu0 0
    %809 = vmatmul.mubr.bf16.gmra.mxu0 %v721
    %v810 = vpop.f32.mrf.mxu0
    %v811 = vadd.f32 0.0, %v810
    %v812 = vpop.f32.mrf.mxu0
    %v813 = vpop.f32.mrf.mxu0
    %v814 = vadd.f32 0.0, %v813
    %v815 = vpop.f32.mrf.mxu0
    %816 = vmatprep.mubr.bf16.mxu0 0
    %817 = vmatmul.mubr.bf16.gmra.mxu0 %v724
    %v818 = vpop.f32.mrf.mxu0
    %v819 = vadd.f32 0.0, %v818
    %v820 = vpop.f32.mrf.mxu0
    %v821 = vpop.f32.mrf.mxu0
    %v822 = vadd.f32 0.0, %v821
    %v823 = vpop.f32.mrf.mxu0
    %824 = vmatprep.mubr.bf16.mxu0 0
    %825 = vmatmul.mubr.bf16.gmra.mxu0 %v727
    %v826 = vpop.f32.mrf.mxu0
    %v827 = vadd.f32 0.0, %v826
    %v828 = vpop.f32.mrf.mxu0
    %v829 = vpop.f32.mrf.mxu0
    %v830 = vadd.f32 0.0, %v829
    %v831 = vpop.f32.mrf.mxu0
    %832 = vmatprep.mubr.bf16.mxu0 0
    %833 = vmatmul.mubr.bf16.gmra.mxu0 %v730
    %v834 = vpop.f32.mrf.mxu0
    %v835 = vadd.f32 0.0, %v834
    %v836 = vpop.f32.mrf.mxu0
    %v837 = vpop.f32.mrf.mxu0
    %v838 = vadd.f32 0.0, %v837
    %v839 = vpop.f32.mrf.mxu0
    %840 = vmatprep.mubr.bf16.mxu0 0
    %841 = vmatmul.mubr.bf16.gmra.mxu0 %v733
    %v842 = vpop.f32.mrf.mxu0
    %v843 = vadd.f32 0.0, %v842
    %v844 = vpop.f32.mrf.mxu0
    %v845 = vpop.f32.mrf.mxu0
    %v846 = vadd.f32 0.0, %v845
    %v847 = vpop.f32.mrf.mxu0
    %848 = vmatprep.mubr.bf16.mxu0 0
    %849 = vmatmul.mubr.bf16.gmra.mxu0 %v736
    %v850 = vpop.f32.mrf.mxu0
    %v851 = vadd.f32 0.0, %v850
    %v852 = vpop.f32.mrf.mxu0
    %v853 = vpop.f32.mrf.mxu0
    %v854 = vadd.f32 0.0, %v853
    %v855 = vpop.f32.mrf.mxu0
    %856 = vmatprep.mubr.bf16.mxu0 0
    %857 = vmatmul.mubr.bf16.gmra.mxu0 %v739
    %v858 = vpop.f32.mrf.mxu0
    %v859 = vadd.f32 0.0, %v858
    %v860 = vpop.f32.mrf.mxu0
    %v861 = vpop.f32.mrf.mxu0
    %v862 = vadd.f32 0.0, %v861
    %v863 = vpop.f32.mrf.mxu0
    %864 = vmatprep.mubr.bf16.mxu0 0
    %865 = vmatmul.mubr.bf16.gmra.mxu0 %v742
    %v866 = vpop.f32.mrf.mxu0
    %v867 = vadd.f32 0.0, %v866
    %v868 = vpop.f32.mrf.mxu0
    %v869 = vpop.f32.mrf.mxu0
    %v870 = vadd.f32 0.0, %v869
    %v871 = vpop.f32.mrf.mxu0
    %872 = vdwg.mxu0
    %v873 = vsub.f32 %v779, %v827
    %v874 = vsub.f32 %v782, %v830
    %v875 = vsub.f32 %v787, %v835
    %v876 = vsub.f32 %v790, %v838
    %v877 = vsub.f32 %v795, %v843
    %v878 = vsub.f32 %v798, %v846
    %v879 = vsub.f32 %v803, %v851
    %v880 = vsub.f32 %v806, %v854
    %v881 = vsub.f32 %v811, %v859
    %v882 = vsub.f32 %v814, %v862
    %v883 = vsub.f32 %v819, %v867
    %v884 = vsub.f32 %v822, %v870
    %v885 = vand.u32 2147483647, %v873
    %v886 = vand.u32 2147483647, %v874
    %v887 = vand.u32 2147483647, %v875
    %v888 = vand.u32 2147483647, %v876
    %v889 = vand.u32 2147483647, %v877
    %v890 = vand.u32 2147483647, %v878
    %v891 = vand.u32 2147483647, %v879
    %v892 = vand.u32 2147483647, %v880
    %v893 = vand.u32 2147483647, %v881
    %v894 = vand.u32 2147483647, %v882
    %v895 = vand.u32 2147483647, %v883
    %v896 = vand.u32 2147483647, %v884
    %v897 = vmul.f32 %v779, %v827
    %v898 = vmul.f32 %v782, %v830
    %v899 = vmul.f32 %v787, %v835
    %v900 = vmul.f32 %v790, %v838
    %v901 = vmul.f32 %v795, %v843
    %v902 = vmul.f32 %v798, %v846
    %v903 = vmul.f32 %v803, %v851
    %v904 = vmul.f32 %v806, %v854
    %v905 = vmul.f32 %v811, %v859
    %v906 = vmul.f32 %v814, %v862
    %v907 = vmul.f32 %v819, %v867
    %v908 = vmul.f32 %v822, %v870
    %v909 = vld [vmem:[%s5 + $0x28] sm:$0xf]
    %v910 = vld [vmem:[%s5 + $0x2c] sm:$0xf]
    %v911 = vld [vmem:[%s5 + $0x30] sm:$0xf]
    %v912 = vld [vmem:[%s5 + $0x34] sm:$0xf]
    %v913 = vld [vmem:[%s5 + $0x38] sm:$0xf]
    %v914 = vld [vmem:[%s5 + $0x3c] sm:$0xf]
    %v915 = vld [vmem:[%s5 + $0x40] sm:$0xf]
    %v916 = vld [vmem:[%s5 + $0x44] sm:$0xf]
    %v917 = vpack.c.bf16 %v782, %v779
    %v918 = vpack.c.bf16 %v790, %v787
    %v919 = vpack.c.bf16 %v798, %v795
    %v920 = vpack.c.bf16 %v806, %v803
    %v921 = vpack.c.bf16 %v814, %v811
    %v922 = vpack.c.bf16 %v822, %v819
    %v923 = vpack.c.bf16 %v830, %v827
    %v924 = vpack.c.bf16 %v838, %v835
    %v925 = vpack.c.bf16 %v846, %v843
    %v926 = vpack.c.bf16 %v854, %v851
    %v927 = vpack.c.bf16 %v862, %v859
    %v928 = vpack.c.bf16 %v870, %v867
    %v931 = vunpack.c.l.b16 %v911
    %v932 = vunpack.c.l.b16 %v912
    %v933 = vpack.c.b16 %v932, %v931
    %v936 = vsel %vm125, %v923, 0
    %v939 = vsel %vm125, %v924, 0
    %v942 = vsel %vm125, %v925, 0
    %v945 = vsel %vm125, %v926, 0
    %v948 = vsel %vm125, %v927, 0
    %v951 = vsel %vm125, %v928, 0
    %953 = vmatprep.subr.bf16.mxu0 0
    %954 = vmatpush1.bf16.msra.mxu0 0
    %955 = vmatprep.subr.bf16.mxu0 0
    %956 = vmatpush1.bf16.msra.mxu0 0
    %957 = vmatprep.subr.bf16.mxu0 0
    %958 = vmatpush1.bf16.msra.mxu0 0
    %959 = vmatprep.subr.bf16.mxu0 0
    %960 = vmatpush1.bf16.msra.mxu0 0
    %961 = vmatprep.subr.bf16.mxu0 0
    %962 = vmatpush1.bf16.msra.mxu0 0
    %963 = vmatprep.subr.bf16.mxu0 0
    %964 = vmatpush1.bf16.msra.mxu0 0
    %965 = vmatprep.subr.bf16.mxu0 0
    %966 = vmatpush1.bf16.msra.mxu0 0
    %967 = vmatprep.subr.bf16.mxu0 0
    %968 = vmatpush1.bf16.msra.mxu0 %v933
    %969 = vmatprep.subr.bf16.mxu0 0
    %970 = vmatpush2.bf16.msra.mxu0 0
    %971 = vmatprep.subr.bf16.mxu0 0
    %972 = vmatpush2.bf16.msra.mxu0 0
    %973 = vmatprep.subr.bf16.mxu0 0
    %974 = vmatpush2.bf16.msra.mxu0 0
    %975 = vmatprep.subr.bf16.mxu0 0
    %976 = vmatpush2.bf16.msra.mxu0 0
    %977 = vmatprep.subr.bf16.mxu0 0
    %978 = vmatpush2.bf16.msra.mxu0 0
    %979 = vmatprep.subr.bf16.mxu0 0
    %980 = vmatpush2.bf16.msra.mxu0 0
    %981 = vmatprep.subr.bf16.mxu0 0
    %982 = vmatpush2.bf16.msra.mxu0 0
    %983 = vmatprep.subr.bf16.mxu0 0
    %984 = vmatpush2.bf16.msra.mxu0 0
    %985 = vmatprep.mubr.bf16.mxu0 0
    %986 = vmatmul.mubr.bf16.gmra.mxu0 %v936
    %v987 = vpop.f32.mrf.mxu0
    %v988 = vadd.f32 0.0, %v987
    %v989 = vpop.f32.mrf.mxu0
    %v990 = vpop.f32.mrf.mxu0
    %v991 = vadd.f32 0.0, %v990
    %v992 = vpop.f32.mrf.mxu0
    %993 = vmatprep.mubr.bf16.mxu0 0
    %994 = vmatmul.mubr.bf16.gmra.mxu0 %v939
    %v995 = vpop.f32.mrf.mxu0
    %v996 = vadd.f32 0.0, %v995
    %v997 = vpop.f32.mrf.mxu0
    %v998 = vpop.f32.mrf.mxu0
    %v999 = vadd.f32 0.0, %v998
    %v1000 = vpop.f32.mrf.mxu0
    %1001 = vmatprep.mubr.bf16.mxu0 0
    %1002 = vmatmul.mubr.bf16.gmra.mxu0 %v942
    %v1003 = vpop.f32.mrf.mxu0
    %v1004 = vadd.f32 0.0, %v1003
    %v1005 = vpop.f32.mrf.mxu0
    %v1006 = vpop.f32.mrf.mxu0
    %v1007 = vadd.f32 0.0, %v1006
    %v1008 = vpop.f32.mrf.mxu0
    %1009 = vmatprep.mubr.bf16.mxu0 0
    %1010 = vmatmul.mubr.bf16.gmra.mxu0 %v945
    %v1011 = vpop.f32.mrf.mxu0
    %v1012 = vadd.f32 0.0, %v1011
    %v1013 = vpop.f32.mrf.mxu0
    %v1014 = vpop.f32.mrf.mxu0
    %v1015 = vadd.f32 0.0, %v1014
    %v1016 = vpop.f32.mrf.mxu0
    %1017 = vmatprep.mubr.bf16.mxu0 0
    %1018 = vmatmul.mubr.bf16.gmra.mxu0 %v948
    %v1019 = vpop.f32.mrf.mxu0
    %v1020 = vadd.f32 0.0, %v1019
    %v1021 = vpop.f32.mrf.mxu0
    %v1022 = vpop.f32.mrf.mxu0
    %v1023 = vadd.f32 0.0, %v1022
    %v1024 = vpop.f32.mrf.mxu0
    %1025 = vmatprep.mubr.bf16.mxu0 0
    %1026 = vmatmul.mubr.bf16.gmra.mxu0 %v951
    %v1027 = vpop.f32.mrf.mxu0
    %v1028 = vadd.f32 0.0, %v1027
    %v1029 = vpop.f32.mrf.mxu0
    %v1030 = vpop.f32.mrf.mxu0
    %v1031 = vadd.f32 0.0, %v1030
    %v1032 = vpop.f32.mrf.mxu0
    %1033 = vdwg.mxu0
    %v1036 = vunpack.c.l.b16 %v909
    %v1037 = vunpack.c.l.b16 %v910
    %v1038 = vpack.c.b16 %v1037, %v1036
    %v1041 = vsel %vm125, %v917, 0
    %v1044 = vsel %vm125, %v918, 0
    %v1047 = vsel %vm125, %v919, 0
    %v1050 = vsel %vm125, %v920, 0
    %v1053 = vsel %vm125, %v921, 0
    %v1056 = vsel %vm125, %v922, 0
    %1058 = vmatprep.subr.bf16.mxu0 0
    %1059 = vmatpush1.bf16.msra.mxu0 0
    %1060 = vmatprep.subr.bf16.mxu0 0
    %1061 = vmatpush1.bf16.msra.mxu0 0
    %1062 = vmatprep.subr.bf16.mxu0 0
    %1063 = vmatpush1.bf16.msra.mxu0 0
    %1064 = vmatprep.subr.bf16.mxu0 0
    %1065 = vmatpush1.bf16.msra.mxu0 0
    %1066 = vmatprep.subr.bf16.mxu0 0
    %1067 = vmatpush1.bf16.msra.mxu0 0
    %1068 = vmatprep.subr.bf16.mxu0 0
    %1069 = vmatpush1.bf16.msra.mxu0 0
    %1070 = vmatprep.subr.bf16.mxu0 0
    %1071 = vmatpush1.bf16.msra.mxu0 0
    %1072 = vmatprep.subr.bf16.mxu0 0
    %1073 = vmatpush1.bf16.msra.mxu0 %v1038
    %1074 = vmatprep.subr.bf16.mxu0 0
    %1075 = vmatpush2.bf16.msra.mxu0 0
    %1076 = vmatprep.subr.bf16.mxu0 0
    %1077 = vmatpush2.bf16.msra.mxu0 0
    %1078 = vmatprep.subr.bf16.mxu0 0
    %1079 = vmatpush2.bf16.msra.mxu0 0
    %1080 = vmatprep.subr.bf16.mxu0 0
    %1081 = vmatpush2.bf16.msra.mxu0 0
    %1082 = vmatprep.subr.bf16.mxu0 0
    %1083 = vmatpush2.bf16.msra.mxu0 0
    %1084 = vmatprep.subr.bf16.mxu0 0
    %1085 = vmatpush2.bf16.msra.mxu0 0
    %1086 = vmatprep.subr.bf16.mxu0 0
    %1087 = vmatpush2.bf16.msra.mxu0 0
    %1088 = vmatprep.subr.bf16.mxu0 0
    %1089 = vmatpush2.bf16.msra.mxu0 0
    %1090 = vmatprep.mubr.bf16.mxu0 0
    %1091 = vmatmul.mubr.bf16.gmra.mxu0 %v1041
    %v1092 = vpop.f32.mrf.mxu0
    %v1093 = vadd.f32 %v988, %v1092
    %v1094 = vpop.f32.mrf.mxu0
    %v1095 = vpop.f32.mrf.mxu0
    %v1096 = vadd.f32 %v991, %v1095
    %v1097 = vpop.f32.mrf.mxu0
    %1098 = vmatprep.mubr.bf16.mxu0 0
    %1099 = vmatmul.mubr.bf16.gmra.mxu0 %v1044
    %v1100 = vpop.f32.mrf.mxu0
    %v1101 = vadd.f32 %v996, %v1100
    %v1102 = vpop.f32.mrf.mxu0
    %v1103 = vpop.f32.mrf.mxu0
    %v1104 = vadd.f32 %v999, %v1103
    %v1105 = vpop.f32.mrf.mxu0
    %1106 = vmatprep.mubr.bf16.mxu0 0
    %1107 = vmatmul.mubr.bf16.gmra.mxu0 %v1047
    %v1108 = vpop.f32.mrf.mxu0
    %v1109 = vadd.f32 %v1004, %v1108
    %v1110 = vpop.f32.mrf.mxu0
    %v1111 = vpop.f32.mrf.mxu0
    %v1112 = vadd.f32 %v1007, %v1111
    %v1113 = vpop.f32.mrf.mxu0
    %1114 = vmatprep.mubr.bf16.mxu0 0
    %1115 = vmatmul.mubr.bf16.gmra.mxu0 %v1050
    %v1116 = vpop.f32.mrf.mxu0
    %v1117 = vadd.f32 %v1012, %v1116
    %v1118 = vpop.f32.mrf.mxu0
    %v1119 = vpop.f32.mrf.mxu0
    %v1120 = vadd.f32 %v1015, %v1119
    %v1121 = vpop.f32.mrf.mxu0
    %1122 = vmatprep.mubr.bf16.mxu0 0
    %1123 = vmatmul.mubr.bf16.gmra.mxu0 %v1053
    %v1124 = vpop.f32.mrf.mxu0
    %v1125 = vadd.f32 %v1020, %v1124
    %v1126 = vpop.f32.mrf.mxu0
    %v1127 = vpop.f32.mrf.mxu0
    %v1128 = vadd.f32 %v1023, %v1127
    %v1129 = vpop.f32.mrf.mxu0
    %1130 = vmatprep.mubr.bf16.mxu0 0
    %1131 = vmatmul.mubr.bf16.gmra.mxu0 %v1056
    %v1132 = vpop.f32.mrf.mxu0
    %v1133 = vadd.f32 %v1028, %v1132
    %v1134 = vpop.f32.mrf.mxu0
    %v1135 = vpop.f32.mrf.mxu0
    %v1136 = vadd.f32 %v1031, %v1135
    %v1137 = vpop.f32.mrf.mxu0
    %1138 = vdwg.mxu0
    %v1139 = vpack.c.bf16 %v886, %v885
    %v1140 = vpack.c.bf16 %v888, %v887
    %v1141 = vpack.c.bf16 %v890, %v889
    %v1142 = vpack.c.bf16 %v892, %v891
    %v1143 = vpack.c.bf16 %v894, %v893
    %v1144 = vpack.c.bf16 %v896, %v895
    %v1147 = vunpack.c.l.b16 %v913
    %v1148 = vunpack.c.l.b16 %v914
    %v1149 = vpack.c.b16 %v1148, %v1147
    %v1152 = vsel %vm125, %v1139, 0
    %v1155 = vsel %vm125, %v1140, 0
    %v1158 = vsel %vm125, %v1141, 0
    %v1161 = vsel %vm125, %v1142, 0
    %v1164 = vsel %vm125, %v1143, 0
    %v1167 = vsel %vm125, %v1144, 0
    %1169 = vmatprep.subr.bf16.mxu0 0
    %1170 = vmatpush1.bf16.msra.mxu0 0
    %1171 = vmatprep.subr.bf16.mxu0 0
    %1172 = vmatpush1.bf16.msra.mxu0 0
    %1173 = vmatprep.subr.bf16.mxu0 0
    %1174 = vmatpush1.bf16.msra.mxu0 0
    %1175 = vmatprep.subr.bf16.mxu0 0
    %1176 = vmatpush1.bf16.msra.mxu0 0
    %1177 = vmatprep.subr.bf16.mxu0 0
    %1178 = vmatpush1.bf16.msra.mxu0 0
    %1179 = vmatprep.subr.bf16.mxu0 0
    %1180 = vmatpush1.bf16.msra.mxu0 0
    %1181 = vmatprep.subr.bf16.mxu0 0
    %1182 = vmatpush1.bf16.msra.mxu0 0
    %1183 = vmatprep.subr.bf16.mxu0 0
    %1184 = vmatpush1.bf16.msra.mxu0 %v1149
    %1185 = vmatprep.subr.bf16.mxu0 0
    %1186 = vmatpush2.bf16.msra.mxu0 0
    %1187 = vmatprep.subr.bf16.mxu0 0
    %1188 = vmatpush2.bf16.msra.mxu0 0
    %1189 = vmatprep.subr.bf16.mxu0 0
    %1190 = vmatpush2.bf16.msra.mxu0 0
    %1191 = vmatprep.subr.bf16.mxu0 0
    %1192 = vmatpush2.bf16.msra.mxu0 0
    %1193 = vmatprep.subr.bf16.mxu0 0
    %1194 = vmatpush2.bf16.msra.mxu0 0
    %1195 = vmatprep.subr.bf16.mxu0 0
    %1196 = vmatpush2.bf16.msra.mxu0 0
    %1197 = vmatprep.subr.bf16.mxu0 0
    %1198 = vmatpush2.bf16.msra.mxu0 0
    %1199 = vmatprep.subr.bf16.mxu0 0
    %1200 = vmatpush2.bf16.msra.mxu0 0
    %1201 = vmatprep.mubr.bf16.mxu0 0
    %1202 = vmatmul.mubr.bf16.gmra.mxu0 %v1152
    %v1203 = vpop.f32.mrf.mxu0
    %v1204 = vadd.f32 0.0, %v1203
    %v1205 = vpop.f32.mrf.mxu0
    %v1206 = vpop.f32.mrf.mxu0
    %v1207 = vadd.f32 0.0, %v1206
    %v1208 = vpop.f32.mrf.mxu0
    %1209 = vmatprep.mubr.bf16.mxu0 0
    %1210 = vmatmul.mubr.bf16.gmra.mxu0 %v1155
    %v1211 = vpop.f32.mrf.mxu0
    %v1212 = vadd.f32 0.0, %v1211
    %v1213 = vpop.f32.mrf.mxu0
    %v1214 = vpop.f32.mrf.mxu0
    %v1215 = vadd.f32 0.0, %v1214
    %v1216 = vpop.f32.mrf.mxu0
    %1217 = vmatprep.mubr.bf16.mxu0 0
    %1218 = vmatmul.mubr.bf16.gmra.mxu0 %v1158
    %v1219 = vpop.f32.mrf.mxu0
    %v1220 = vadd.f32 0.0, %v1219
    %v1221 = vpop.f32.mrf.mxu0
    %v1222 = vpop.f32.mrf.mxu0
    %v1223 = vadd.f32 0.0, %v1222
    %v1224 = vpop.f32.mrf.mxu0
    %1225 = vmatprep.mubr.bf16.mxu0 0
    %1226 = vmatmul.mubr.bf16.gmra.mxu0 %v1161
    %v1227 = vpop.f32.mrf.mxu0
    %v1228 = vadd.f32 0.0, %v1227
    %v1229 = vpop.f32.mrf.mxu0
    %v1230 = vpop.f32.mrf.mxu0
    %v1231 = vadd.f32 0.0, %v1230
    %v1232 = vpop.f32.mrf.mxu0
    %1233 = vmatprep.mubr.bf16.mxu0 0
    %1234 = vmatmul.mubr.bf16.gmra.mxu0 %v1164
    %v1235 = vpop.f32.mrf.mxu0
    %v1236 = vadd.f32 0.0, %v1235
    %v1237 = vpop.f32.mrf.mxu0
    %v1238 = vpop.f32.mrf.mxu0
    %v1239 = vadd.f32 0.0, %v1238
    %v1240 = vpop.f32.mrf.mxu0
    %1241 = vmatprep.mubr.bf16.mxu0 0
    %1242 = vmatmul.mubr.bf16.gmra.mxu0 %v1167
    %v1243 = vpop.f32.mrf.mxu0
    %v1244 = vadd.f32 0.0, %v1243
    %v1245 = vpop.f32.mrf.mxu0
    %v1246 = vpop.f32.mrf.mxu0
    %v1247 = vadd.f32 0.0, %v1246
    %v1248 = vpop.f32.mrf.mxu0
    %1249 = vdwg.mxu0
    %v1250 = vadd.f32 %v1093, %v1204
    %v1251 = vadd.f32 %v1096, %v1207
    %v1252 = vadd.f32 %v1101, %v1212
    %v1253 = vadd.f32 %v1104, %v1215
    %v1254 = vadd.f32 %v1109, %v1220
    %v1255 = vadd.f32 %v1112, %v1223
    %v1256 = vadd.f32 %v1117, %v1228
    %v1257 = vadd.f32 %v1120, %v1231
    %v1258 = vadd.f32 %v1125, %v1236
    %v1259 = vadd.f32 %v1128, %v1239
    %v1260 = vadd.f32 %v1133, %v1244
    %v1261 = vadd.f32 %v1136, %v1247
    %v1262 = vpack.c.bf16 %v898, %v897
    %v1263 = vpack.c.bf16 %v900, %v899
    %v1264 = vpack.c.bf16 %v902, %v901
    %v1265 = vpack.c.bf16 %v904, %v903
    %v1266 = vpack.c.bf16 %v906, %v905
    %v1267 = vpack.c.bf16 %v908, %v907
    %v1270 = vunpack.c.l.b16 %v915
    %v1271 = vunpack.c.l.b16 %v916
    %v1272 = vpack.c.b16 %v1271, %v1270
    %v1275 = vsel %vm125, %v1262, 0
    %v1278 = vsel %vm125, %v1263, 0
    %v1281 = vsel %vm125, %v1264, 0
    %v1284 = vsel %vm125, %v1265, 0
    %v1287 = vsel %vm125, %v1266, 0
    %v1290 = vsel %vm125, %v1267, 0
    %1292 = vmatprep.subr.bf16.mxu0 0
    %1293 = vmatpush1.bf16.msra.mxu0 0
    %1294 = vmatprep.subr.bf16.mxu0 0
    %1295 = vmatpush1.bf16.msra.mxu0 0
    %1296 = vmatprep.subr.bf16.mxu0 0
    %1297 = vmatpush1.bf16.msra.mxu0 0
    %1298 = vmatprep.subr.bf16.mxu0 0
    %1299 = vmatpush1.bf16.msra.mxu0 0
    %1300 = vmatprep.subr.bf16.mxu0 0
    %1301 = vmatpush1.bf16.msra.mxu0 0
    %1302 = vmatprep.subr.bf16.mxu0 0
    %1303 = vmatpush1.bf16.msra.mxu0 0
    %1304 = vmatprep.subr.bf16.mxu0 0
    %1305 = vmatpush1.bf16.msra.mxu0 0
    %1306 = vmatprep.subr.bf16.mxu0 0
    %1307 = vmatpush1.bf16.msra.mxu0 %v1272
    %1308 = vmatprep.subr.bf16.mxu0 0
    %1309 = vmatpush2.bf16.msra.mxu0 0
    %1310 = vmatprep.subr.bf16.mxu0 0
    %1311 = vmatpush2.bf16.msra.mxu0 0
    %1312 = vmatprep.subr.bf16.mxu0 0
    %1313 = vmatpush2.bf16.msra.mxu0 0
    %1314 = vmatprep.subr.bf16.mxu0 0
    %1315 = vmatpush2.bf16.msra.mxu0 0
    %1316 = vmatprep.subr.bf16.mxu0 0
    %1317 = vmatpush2.bf16.msra.mxu0 0
    %1318 = vmatprep.subr.bf16.mxu0 0
    %1319 = vmatpush2.bf16.msra.mxu0 0
    %1320 = vmatprep.subr.bf16.mxu0 0
    %1321 = vmatpush2.bf16.msra.mxu0 0
    %1322 = vmatprep.subr.bf16.mxu0 0
    %1323 = vmatpush2.bf16.msra.mxu0 0
    %1324 = vmatprep.mubr.bf16.mxu0 0
    %1325 = vmatmul.mubr.bf16.gmra.mxu0 %v1275
    %v1326 = vpop.f32.mrf.mxu0
    %v1327 = vadd.f32 0.0, %v1326
    %v1328 = vpop.f32.mrf.mxu0
    %v1329 = vpop.f32.mrf.mxu0
    %v1330 = vadd.f32 0.0, %v1329
    %v1331 = vpop.f32.mrf.mxu0
    %1332 = vmatprep.mubr.bf16.mxu0 0
    %1333 = vmatmul.mubr.bf16.gmra.mxu0 %v1278
    %v1334 = vpop.f32.mrf.mxu0
    %v1335 = vadd.f32 0.0, %v1334
    %v1336 = vpop.f32.mrf.mxu0
    %v1337 = vpop.f32.mrf.mxu0
    %v1338 = vadd.f32 0.0, %v1337
    %v1339 = vpop.f32.mrf.mxu0
    %1340 = vmatprep.mubr.bf16.mxu0 0
    %1341 = vmatmul.mubr.bf16.gmra.mxu0 %v1281
    %v1342 = vpop.f32.mrf.mxu0
    %v1343 = vadd.f32 0.0, %v1342
    %v1344 = vpop.f32.mrf.mxu0
    %v1345 = vpop.f32.mrf.mxu0
    %v1346 = vadd.f32 0.0, %v1345
    %v1347 = vpop.f32.mrf.mxu0
    %1348 = vmatprep.mubr.bf16.mxu0 0
    %1349 = vmatmul.mubr.bf16.gmra.mxu0 %v1284
    %v1350 = vpop.f32.mrf.mxu0
    %v1351 = vadd.f32 0.0, %v1350
    %v1352 = vpop.f32.mrf.mxu0
    %v1353 = vpop.f32.mrf.mxu0
    %v1354 = vadd.f32 0.0, %v1353
    %v1355 = vpop.f32.mrf.mxu0
    %1356 = vmatprep.mubr.bf16.mxu0 0
    %1357 = vmatmul.mubr.bf16.gmra.mxu0 %v1287
    %v1358 = vpop.f32.mrf.mxu0
    %v1359 = vadd.f32 0.0, %v1358
    %v1360 = vpop.f32.mrf.mxu0
    %v1361 = vpop.f32.mrf.mxu0
    %v1362 = vadd.f32 0.0, %v1361
    %v1363 = vpop.f32.mrf.mxu0
    %1364 = vmatprep.mubr.bf16.mxu0 0
    %1365 = vmatmul.mubr.bf16.gmra.mxu0 %v1290
    %v1366 = vpop.f32.mrf.mxu0
    %v1367 = vadd.f32 0.0, %v1366
    %v1368 = vpop.f32.mrf.mxu0
    %v1369 = vpop.f32.mrf.mxu0
    %v1370 = vadd.f32 0.0, %v1369
    %v1371 = vpop.f32.mrf.mxu0
    %1372 = vdwg.mxu0
    %v1373 = vadd.f32 %v1250, %v1327
    %v1374 = vadd.f32 %v1251, %v1330
    %v1375 = vadd.f32 %v1252, %v1335
    %v1376 = vadd.f32 %v1253, %v1338
    %v1377 = vadd.f32 %v1254, %v1343
    %v1378 = vadd.f32 %v1255, %v1346
    %v1379 = vadd.f32 %v1256, %v1351
    %v1380 = vadd.f32 %v1257, %v1354
    %v1381 = vadd.f32 %v1258, %v1359
    %v1382 = vadd.f32 %v1259, %v1362
    %v1383 = vadd.f32 %v1260, %v1367
    %v1384 = vadd.f32 %v1261, %v1370
    %v1385 = vlaneseq
    %v1386 = vshrl.u32 %v1385, 7
    %v1387 = vsub.s32 0, %v1386
    %v1388 = vrot.slane %v58, %v1387
    %v1389 = vadd.f32 %v1373, %v1388
    %v1390 = vadd.f32 %v1374, %v1388
    %v1391 = vadd.f32 %v1375, %v1388
    %v1392 = vadd.f32 %v1376, %v1388
    %v1393 = vadd.f32 %v1377, %v1388
    %v1394 = vadd.f32 %v1378, %v1388
    %v1395 = vadd.f32 %v1379, %v1388
    %v1396 = vadd.f32 %v1380, %v1388
    %v1397 = vadd.f32 %v1381, %v1388
    %v1398 = vadd.f32 %v1382, %v1388
    %v1399 = vadd.f32 %v1383, %v1388
    %v1400 = vadd.f32 %v1384, %v1388
    %v1401 = vmax.f32 %v1389, 0.0
    %v1402 = vmax.f32 %v1390, 0.0
    %v1403 = vmax.f32 %v1391, 0.0
    %v1404 = vmax.f32 %v1392, 0.0
    %v1405 = vmax.f32 %v1393, 0.0
    %v1406 = vmax.f32 %v1394, 0.0
    %v1407 = vmax.f32 %v1395, 0.0
    %v1408 = vmax.f32 %v1396, 0.0
    %v1409 = vmax.f32 %v1397, 0.0
    %v1410 = vmax.f32 %v1398, 0.0
    %v1411 = vmax.f32 %v1399, 0.0
    %v1412 = vmax.f32 %v1400, 0.0
    %v1413 = vld [vmem:[%s5 + $0x48] sm:$0xf]
    %v1414 = vld [vmem:[%s5 + $0x4c] sm:$0xf]
    %v1415 = vld [vmem:[%s5 + $0x50] sm:$0xf]
    %v1416 = vld [vmem:[%s5 + $0x54] sm:$0xf]
    %v1417 = vld [vmem:[%s5 + $0x58] sm:$0xf]
    %v1418 = vld [vmem:[%s5 + $0x5c] sm:$0xf]
    %v1419 = vld [vmem:[%s5 + $0x60] sm:$0xf]
    %v1420 = vld [vmem:[%s5 + $0x64] sm:$0xf]
    %v1421 = vpack.c.bf16 %v1402, %v1401
    %v1422 = vpack.c.bf16 %v1404, %v1403
    %v1423 = vpack.c.bf16 %v1406, %v1405
    %v1424 = vpack.c.bf16 %v1408, %v1407
    %v1425 = vpack.c.bf16 %v1410, %v1409
    %v1426 = vpack.c.bf16 %v1412, %v1411
    %v1427 = vlaneseq
    %v1428 = vshrl.u32 %v1427, 7
    %v1429 = vsub.s32 0, %v1428
    %v1430 = vrot.slane %v59, %v1429
    %v1439 = vunpack.c.l.b16 %v1413
    %v1440 = vunpack.c.l.b16 %v1414
    %v1441 = vunpack.c.l.b16 %v1415
    %v1442 = vunpack.c.l.b16 %v1416
    %v1443 = vunpack.c.l.b16 %v1417
    %v1444 = vunpack.c.l.b16 %v1418
    %v1445 = vunpack.c.l.b16 %v1419
    %v1446 = vunpack.c.l.b16 %v1420
    %v1447 = vpack.c.b16 %v1440, %v1439
    %v1448 = vpack.c.b16 %v1442, %v1441
    %v1449 = vpack.c.b16 %v1444, %v1443
    %v1450 = vpack.c.b16 %v1446, %v1445
    %vm1455 = vcmask 523264
    %v1457 = vsel %vm1455, %v1421, 0
    %v1460 = vsel %vm1455, %v1422, 0
    %v1463 = vsel %vm1455, %v1423, 0
    %v1466 = vsel %vm1455, %v1424, 0
    %v1469 = vsel %vm1455, %v1425, 0
    %v1472 = vsel %vm1455, %v1426, 0
    %1474 = vmatprep.subr.bf16.mxu0 0
    %1475 = vmatpush1.bf16.msra.mxu0 0
    %1476 = vmatprep.subr.bf16.mxu0 0
    %1477 = vmatpush1.bf16.msra.mxu0 0
    %1478 = vmatprep.subr.bf16.mxu0 0
    %1479 = vmatpush1.bf16.msra.mxu0 0
    %1480 = vmatprep.subr.bf16.mxu0 0
    %1481 = vmatpush1.bf16.msra.mxu0 0
    %1482 = vmatprep.subr.bf16.mxu0 0
    %1483 = vmatpush1.bf16.msra.mxu0 %v1450
    %1484 = vmatprep.subr.bf16.mxu0 0
    %1485 = vmatpush1.bf16.msra.mxu0 %v1449
    %1486 = vmatprep.subr.bf16.mxu0 0
    %1487 = vmatpush1.bf16.msra.mxu0 %v1448
    %1488 = vmatprep.subr.bf16.mxu0 0
    %1489 = vmatpush1.bf16.msra.mxu0 %v1447
    %1490 = vmatprep.subr.bf16.mxu0 0
    %1491 = vmatpush2.bf16.msra.mxu0 0
    %1492 = vmatprep.subr.bf16.mxu0 0
    %1493 = vmatpush2.bf16.msra.mxu0 0
    %1494 = vmatprep.subr.bf16.mxu0 0
    %1495 = vmatpush2.bf16.msra.mxu0 0
    %1496 = vmatprep.subr.bf16.mxu0 0
    %1497 = vmatpush2.bf16.msra.mxu0 0
    %1498 = vmatprep.subr.bf16.mxu0 0
    %1499 = vmatpush2.bf16.msra.mxu0 0
    %1500 = vmatprep.subr.bf16.mxu0 0
    %1501 = vmatpush2.bf16.msra.mxu0 0
    %1502 = vmatprep.subr.bf16.mxu0 0
    %1503 = vmatpush2.bf16.msra.mxu0 0
    %1504 = vmatprep.subr.bf16.mxu0 0
    %1505 = vmatpush2.bf16.msra.mxu0 0
    %1506 = vmatprep.mubr.bf16.mxu0 0
    %1507 = vmatmul.mubr.bf16.gmra.mxu0 %v1457
    %v1508 = vpop.f32.mrf.mxu0
    %v1509 = vadd.f32 %v1430, %v1508
    %v1510 = vpop.f32.mrf.mxu0
    %v1511 = vpop.f32.mrf.mxu0
    %v1512 = vadd.f32 %v1430, %v1511
    %v1513 = vpop.f32.mrf.mxu0
    %1514 = vmatprep.mubr.bf16.mxu0 0
    %1515 = vmatmul.mubr.bf16.gmra.mxu0 %v1460
    %v1516 = vpop.f32.mrf.mxu0
    %v1517 = vadd.f32 %v1430, %v1516
    %v1518 = vpop.f32.mrf.mxu0
    %v1519 = vpop.f32.mrf.mxu0
    %v1520 = vadd.f32 %v1430, %v1519
    %v1521 = vpop.f32.mrf.mxu0
    %1522 = vmatprep.mubr.bf16.mxu0 0
    %1523 = vmatmul.mubr.bf16.gmra.mxu0 %v1463
    %v1524 = vpop.f32.mrf.mxu0
    %v1525 = vadd.f32 %v1430, %v1524
    %v1526 = vpop.f32.mrf.mxu0
    %v1527 = vpop.f32.mrf.mxu0
    %v1528 = vadd.f32 %v1430, %v1527
    %v1529 = vpop.f32.mrf.mxu0
    %1530 = vmatprep.mubr.bf16.mxu0 0
    %1531 = vmatmul.mubr.bf16.gmra.mxu0 %v1466
    %v1532 = vpop.f32.mrf.mxu0
    %v1533 = vadd.f32 %v1430, %v1532
    %v1534 = vpop.f32.mrf.mxu0
    %v1535 = vpop.f32.mrf.mxu0
    %v1536 = vadd.f32 %v1430, %v1535
    %v1537 = vpop.f32.mrf.mxu0
    %1538 = vmatprep.mubr.bf16.mxu0 0
    %1539 = vmatmul.mubr.bf16.gmra.mxu0 %v1469
    %v1540 = vpop.f32.mrf.mxu0
    %v1541 = vadd.f32 %v1430, %v1540
    %v1542 = vpop.f32.mrf.mxu0
    %v1543 = vpop.f32.mrf.mxu0
    %v1544 = vadd.f32 %v1430, %v1543
    %v1545 = vpop.f32.mrf.mxu0
    %1546 = vmatprep.mubr.bf16.mxu0 0
    %1547 = vmatmul.mubr.bf16.gmra.mxu0 %v1472
    %v1548 = vpop.f32.mrf.mxu0
    %v1549 = vadd.f32 %v1430, %v1548
    %v1550 = vpop.f32.mrf.mxu0
    %v1551 = vpop.f32.mrf.mxu0
    %v1552 = vadd.f32 %v1430, %v1551
    %v1553 = vpop.f32.mrf.mxu0
    %1554 = vdwg.mxu0
    %s1555 = sld [smem:[#allocation2]]
    %s1556 = sld [smem:[#allocation2 + $0x1]]
    %s1557 = sld [smem:[#allocation2 + $0x2]]
    %v1558 = vstv %s1555
    %v1559 = vmul.f32 %v1509, %v1558
    %v1560 = vmul.f32 %v1512, %v1558
    %v1561 = vmul.f32 %v1517, %v1558
    %v1562 = vmul.f32 %v1520, %v1558
    %v1563 = vmul.f32 %v1525, %v1558
    %v1564 = vmul.f32 %v1528, %v1558
    %v1565 = vmul.f32 %v1533, %v1558
    %v1566 = vmul.f32 %v1536, %v1558
    %v1567 = vmul.f32 %v1541, %v1558
    %v1568 = vmul.f32 %v1544, %v1558
    %v1569 = vmul.f32 %v1549, %v1558
    %v1570 = vmul.f32 %v1552, %v1558
    %v1571 = vld [vmem:[%s7] sm:$0xff]
    %v1572 = vld [vmem:[%s7 + $0x8] sm:$0xff]
    %v1573 = vld [vmem:[%s7 + $0x10] sm:$0xff]
    %v1574 = vld [vmem:[%s7 + $0x18] sm:$0xff]
    %v1575 = vld [vmem:[%s7 + $0x20] sm:$0xff]
    %v1576 = vld [vmem:[%s7 + $0x28] sm:$0xff]
    %v1577 = vld [vmem:[%s7 + $0x30] sm:$0xff]
    %v1578 = vld [vmem:[%s7 + $0x38] sm:$0xff]
    %v1579 = vld [vmem:[%s7 + $0x40] sm:$0xff]
    %v1580 = vld [vmem:[%s7 + $0x48] sm:$0xff]
    %v1581 = vld [vmem:[%s7 + $0x50] sm:$0xff]
    %v1582 = vld [vmem:[%s7 + $0x58] sm:$0xff]
    %v1583 = vstv %s1556
    %v1584 = vmul.f32 %v1583, %v1571
    %v1585 = vmul.f32 %v1583, %v1572
    %v1586 = vmul.f32 %v1583, %v1573
    %v1587 = vmul.f32 %v1583, %v1574
    %v1588 = vmul.f32 %v1583, %v1575
    %v1589 = vmul.f32 %v1583, %v1576
    %v1590 = vmul.f32 %v1583, %v1577
    %v1591 = vmul.f32 %v1583, %v1578
    %v1592 = vmul.f32 %v1583, %v1579
    %v1593 = vmul.f32 %v1583, %v1580
    %v1594 = vmul.f32 %v1583, %v1581
    %v1595 = vmul.f32 %v1583, %v1582
    %v1596 = vsub.f32 0.0, %v1559
    %v1597 = vsub.f32 0.0, %v1560
    %v1598 = vsub.f32 0.0, %v1561
    %v1599 = vsub.f32 0.0, %v1562
    %v1600 = vsub.f32 0.0, %v1563
    %v1601 = vsub.f32 0.0, %v1564
    %v1602 = vsub.f32 0.0, %v1565
    %v1603 = vsub.f32 0.0, %v1566
    %v1604 = vsub.f32 0.0, %v1567
    %v1605 = vsub.f32 0.0, %v1568
    %v1606 = vsub.f32 0.0, %v1569
    %v1607 = vsub.f32 0.0, %v1570
    %v1608 = vmax.f32 %v1596, 0.0
    %v1609 = vmax.f32 %v1597, 0.0
    %v1610 = vmax.f32 %v1598, 0.0
    %v1611 = vmax.f32 %v1599, 0.0
    %v1612 = vmax.f32 %v1600, 0.0
    %v1613 = vmax.f32 %v1601, 0.0
    %v1614 = vmax.f32 %v1602, 0.0
    %v1615 = vmax.f32 %v1603, 0.0
    %v1616 = vmax.f32 %v1604, 0.0
    %v1617 = vmax.f32 %v1605, 0.0
    %v1618 = vmax.f32 %v1606, 0.0
    %v1619 = vmax.f32 %v1607, 0.0
    %v1620 = vand.u32 2147483647, %v1596
    %v1621 = vand.u32 2147483647, %v1597
    %v1622 = vand.u32 2147483647, %v1598
    %v1623 = vand.u32 2147483647, %v1599
    %v1624 = vand.u32 2147483647, %v1600
    %v1625 = vand.u32 2147483647, %v1601
    %v1626 = vand.u32 2147483647, %v1602
    %v1627 = vand.u32 2147483647, %v1603
    %v1628 = vand.u32 2147483647, %v1604
    %v1629 = vand.u32 2147483647, %v1605
    %v1630 = vand.u32 2147483647, %v1606
    %v1631 = vand.u32 2147483647, %v1607
    %v1632 = vsub.f32 0.0, %v1620
    %v1633 = vsub.f32 0.0, %v1621
    %v1634 = vsub.f32 0.0, %v1622
    %v1635 = vsub.f32 0.0, %v1623
    %v1636 = vsub.f32 0.0, %v1624
    %v1637 = vsub.f32 0.0, %v1625
    %v1638 = vsub.f32 0.0, %v1626
    %v1639 = vsub.f32 0.0, %v1627
    %v1640 = vsub.f32 0.0, %v1628
    %v1641 = vsub.f32 0.0, %v1629
    %v1642 = vsub.f32 0.0, %v1630
    %v1643 = vsub.f32 0.0, %v1631
    %v1644 = vmul.f32 %v1632, 1.442695
    %v1645 = vpow.pop %v1644
    %v1646 = vmul.f32 %v1633, 1.442695
    %v1647 = vpow.pop %v1646
    %v1648 = vmul.f32 %v1634, 1.442695
    %v1649 = vpow.pop %v1648
    %v1650 = vmul.f32 %v1635, 1.442695
    %v1651 = vpow.pop %v1650
    %v1652 = vmul.f32 %v1636, 1.442695
    %v1653 = vpow.pop %v1652
    %v1654 = vmul.f32 %v1637, 1.442695
    %v1655 = vpow.pop %v1654
    %v1656 = vmul.f32 %v1638, 1.442695
    %v1657 = vpow.pop %v1656
    %v1658 = vmul.f32 %v1639, 1.442695
    %v1659 = vpow.pop %v1658
    %v1660 = vmul.f32 %v1640, 1.442695
    %v1661 = vpow.pop %v1660
    %v1662 = vmul.f32 %v1641, 1.442695
    %v1663 = vpow.pop %v1662
    %v1664 = vmul.f32 %v1642, 1.442695
    %v1665 = vpow.pop %v1664
    %v1666 = vmul.f32 %v1643, 1.442695
    %v1667 = vpow.pop %v1666
    %v1668 = vadd.f32 %v1645, 1.0
    %v1669 = vadd.f32 %v1647, 1.0
    %v1670 = vadd.f32 %v1649, 1.0
    %v1671 = vadd.f32 %v1651, 1.0
    %v1672 = vadd.f32 %v1653, 1.0
    %v1673 = vadd.f32 %v1655, 1.0
    %v1674 = vadd.f32 %v1657, 1.0
    %v1675 = vadd.f32 %v1659, 1.0
    %v1676 = vadd.f32 %v1661, 1.0
    %v1677 = vadd.f32 %v1663, 1.0
    %v1678 = vadd.f32 %v1665, 1.0
    %v1679 = vadd.f32 %v1667, 1.0
    %v1680 = vlog2.pop %v1668
    %v1681 = vmul.f32 %v1680, 0.6931472
    %v1682 = vlog2.pop %v1669
    %v1683 = vmul.f32 %v1682, 0.6931472
    %v1684 = vlog2.pop %v1670
    %v1685 = vmul.f32 %v1684, 0.6931472
    %v1686 = vlog2.pop %v1671
    %v1687 = vmul.f32 %v1686, 0.6931472
    %v1688 = vlog2.pop %v1672
    %v1689 = vmul.f32 %v1688, 0.6931472
    %v1690 = vlog2.pop %v1673
    %v1691 = vmul.f32 %v1690, 0.6931472
    %v1692 = vlog2.pop %v1674
    %v1693 = vmul.f32 %v1692, 0.6931472
    %v1694 = vlog2.pop %v1675
    %v1695 = vmul.f32 %v1694, 0.6931472
    %v1696 = vlog2.pop %v1676
    %v1697 = vmul.f32 %v1696, 0.6931472
    %v1698 = vlog2.pop %v1677
    %v1699 = vmul.f32 %v1698, 0.6931472
    %v1700 = vlog2.pop %v1678
    %v1701 = vmul.f32 %v1700, 0.6931472
    %v1702 = vlog2.pop %v1679
    %v1703 = vmul.f32 %v1702, 0.6931472
    %v1704 = vadd.f32 %v1608, %v1681
    %v1705 = vadd.f32 %v1609, %v1683
    %v1706 = vadd.f32 %v1610, %v1685
    %v1707 = vadd.f32 %v1611, %v1687
    %v1708 = vadd.f32 %v1612, %v1689
    %v1709 = vadd.f32 %v1613, %v1691
    %v1710 = vadd.f32 %v1614, %v1693
    %v1711 = vadd.f32 %v1615, %v1695
    %v1712 = vadd.f32 %v1616, %v1697
    %v1713 = vadd.f32 %v1617, %v1699
    %v1714 = vadd.f32 %v1618, %v1701
    %v1715 = vadd.f32 %v1619, %v1703
    %v1716 = vmul.f32 %v1584, %v1704
    %v1717 = vmul.f32 %v1585, %v1705
    %v1718 = vmul.f32 %v1586, %v1706
    %v1719 = vmul.f32 %v1587, %v1707
    %v1720 = vmul.f32 %v1588, %v1708
    %v1721 = vmul.f32 %v1589, %v1709
    %v1722 = vmul.f32 %v1590, %v1710
    %v1723 = vmul.f32 %v1591, %v1711
    %v1724 = vmul.f32 %v1592, %v1712
    %v1725 = vmul.f32 %v1593, %v1713
    %v1726 = vmul.f32 %v1594, %v1714
    %v1727 = vmul.f32 %v1595, %v1715
    %v1728 = vsub.f32 1.0, %v1571
    %v1729 = vsub.f32 1.0, %v1572
    %v1730 = vsub.f32 1.0, %v1573
    %v1731 = vsub.f32 1.0, %v1574
    %v1732 = vsub.f32 1.0, %v1575
    %v1733 = vsub.f32 1.0, %v1576
    %v1734 = vsub.f32 1.0, %v1577
    %v1735 = vsub.f32 1.0, %v1578
    %v1736 = vsub.f32 1.0, %v1579
    %v1737 = vsub.f32 1.0, %v1580
    %v1738 = vsub.f32 1.0, %v1581
    %v1739 = vsub.f32 1.0, %v1582
    %v1740 = vmax.f32 %v1559, 0.0
    %v1741 = vmax.f32 %v1560, 0.0
    %v1742 = vmax.f32 %v1561, 0.0
    %v1743 = vmax.f32 %v1562, 0.0
    %v1744 = vmax.f32 %v1563, 0.0
    %v1745 = vmax.f32 %v1564, 0.0
    %v1746 = vmax.f32 %v1565, 0.0
    %v1747 = vmax.f32 %v1566, 0.0
    %v1748 = vmax.f32 %v1567, 0.0
    %v1749 = vmax.f32 %v1568, 0.0
    %v1750 = vmax.f32 %v1569, 0.0
    %v1751 = vmax.f32 %v1570, 0.0
    %v1752 = vand.u32 2147483647, %v1559
    %v1753 = vand.u32 2147483647, %v1560
    %v1754 = vand.u32 2147483647, %v1561
    %v1755 = vand.u32 2147483647, %v1562
    %v1756 = vand.u32 2147483647, %v1563
    %v1757 = vand.u32 2147483647, %v1564
    %v1758 = vand.u32 2147483647, %v1565
    %v1759 = vand.u32 2147483647, %v1566
    %v1760 = vand.u32 2147483647, %v1567
    %v1761 = vand.u32 2147483647, %v1568
    %v1762 = vand.u32 2147483647, %v1569
    %v1763 = vand.u32 2147483647, %v1570
    %v1764 = vsub.f32 0.0, %v1752
    %v1765 = vsub.f32 0.0, %v1753
    %v1766 = vsub.f32 0.0, %v1754
    %v1767 = vsub.f32 0.0, %v1755
    %v1768 = vsub.f32 0.0, %v1756
    %v1769 = vsub.f32 0.0, %v1757
    %v1770 = vsub.f32 0.0, %v1758
    %v1771 = vsub.f32 0.0, %v1759
    %v1772 = vsub.f32 0.0, %v1760
    %v1773 = vsub.f32 0.0, %v1761
    %v1774 = vsub.f32 0.0, %v1762
    %v1775 = vsub.f32 0.0, %v1763
    %v1776 = vmul.f32 %v1764, 1.442695
    %v1777 = vpow.pop %v1776
    %v1778 = vmul.f32 %v1765, 1.442695
    %v1779 = vpow.pop %v1778
    %v1780 = vmul.f32 %v1766, 1.442695
    %v1781 = vpow.pop %v1780
    %v1782 = vmul.f32 %v1767, 1.442695
    %v1783 = vpow.pop %v1782
    %v1784 = vmul.f32 %v1768, 1.442695
    %v1785 = vpow.pop %v1784
    %v1786 = vmul.f32 %v1769, 1.442695
    %v1787 = vpow.pop %v1786
    %v1788 = vmul.f32 %v1770, 1.442695
    %v1789 = vpow.pop %v1788
    %v1790 = vmul.f32 %v1771, 1.442695
    %v1791 = vpow.pop %v1790
    %v1792 = vmul.f32 %v1772, 1.442695
    %v1793 = vpow.pop %v1792
    %v1794 = vmul.f32 %v1773, 1.442695
    %v1795 = vpow.pop %v1794
    %v1796 = vmul.f32 %v1774, 1.442695
    %v1797 = vpow.pop %v1796
    %v1798 = vmul.f32 %v1775, 1.442695
    %v1799 = vpow.pop %v1798
    %v1800 = vadd.f32 %v1777, 1.0
    %v1801 = vadd.f32 %v1779, 1.0
    %v1802 = vadd.f32 %v1781, 1.0
    %v1803 = vadd.f32 %v1783, 1.0
    %v1804 = vadd.f32 %v1785, 1.0
    %v1805 = vadd.f32 %v1787, 1.0
    %v1806 = vadd.f32 %v1789, 1.0
    %v1807 = vadd.f32 %v1791, 1.0
    %v1808 = vadd.f32 %v1793, 1.0
    %v1809 = vadd.f32 %v1795, 1.0
    %v1810 = vadd.f32 %v1797, 1.0
    %v1811 = vadd.f32 %v1799, 1.0
    %v1812 = vlog2.pop %v1800
    %v1813 = vmul.f32 %v1812, 0.6931472
    %v1814 = vlog2.pop %v1801
    %v1815 = vmul.f32 %v1814, 0.6931472
    %v1816 = vlog2.pop %v1802
    %v1817 = vmul.f32 %v1816, 0.6931472
    %v1818 = vlog2.pop %v1803
    %v1819 = vmul.f32 %v1818, 0.6931472
    %v1820 = vlog2.pop %v1804
    %v1821 = vmul.f32 %v1820, 0.6931472
    %v1822 = vlog2.pop %v1805
    %v1823 = vmul.f32 %v1822, 0.6931472
    %v1824 = vlog2.pop %v1806
    %v1825 = vmul.f32 %v1824, 0.6931472
    %v1826 = vlog2.pop %v1807
    %v1827 = vmul.f32 %v1826, 0.6931472
    %v1828 = vlog2.pop %v1808
    %v1829 = vmul.f32 %v1828, 0.6931472
    %v1830 = vlog2.pop %v1809
    %v1831 = vmul.f32 %v1830, 0.6931472
    %v1832 = vlog2.pop %v1810
    %v1833 = vmul.f32 %v1832, 0.6931472
    %v1834 = vlog2.pop %v1811
    %v1835 = vmul.f32 %v1834, 0.6931472
    %v1836 = vadd.f32 %v1740, %v1813
    %v1837 = vadd.f32 %v1741, %v1815
    %v1838 = vadd.f32 %v1742, %v1817
    %v1839 = vadd.f32 %v1743, %v1819
    %v1840 = vadd.f32 %v1744, %v1821
    %v1841 = vadd.f32 %v1745, %v1823
    %v1842 = vadd.f32 %v1746, %v1825
    %v1843 = vadd.f32 %v1747, %v1827
    %v1844 = vadd.f32 %v1748, %v1829
    %v1845 = vadd.f32 %v1749, %v1831
    %v1846 = vadd.f32 %v1750, %v1833
    %v1847 = vadd.f32 %v1751, %v1835
    %v1848 = vmul.f32 %v1728, %v1836
    %v1849 = vmul.f32 %v1729, %v1837
    %v1850 = vmul.f32 %v1730, %v1838
    %v1851 = vmul.f32 %v1731, %v1839
    %v1852 = vmul.f32 %v1732, %v1840
    %v1853 = vmul.f32 %v1733, %v1841
    %v1854 = vmul.f32 %v1734, %v1842
    %v1855 = vmul.f32 %v1735, %v1843
    %v1856 = vmul.f32 %v1736, %v1844
    %v1857 = vmul.f32 %v1737, %v1845
    %v1858 = vmul.f32 %v1738, %v1846
    %v1859 = vmul.f32 %v1739, %v1847
    %v1860 = vadd.f32 %v1716, %v1848
    %v1861 = vadd.f32 %v1717, %v1849
    %v1862 = vadd.f32 %v1718, %v1850
    %v1863 = vadd.f32 %v1719, %v1851
    %v1864 = vadd.f32 %v1720, %v1852
    %v1865 = vadd.f32 %v1721, %v1853
    %v1866 = vadd.f32 %v1722, %v1854
    %v1867 = vadd.f32 %v1723, %v1855
    %v1868 = vadd.f32 %v1724, %v1856
    %v1869 = vadd.f32 %v1725, %v1857
    %v1870 = vadd.f32 %v1726, %v1858
    %v1871 = vadd.f32 %v1727, %v1859
    %v1872 = vadd.f32 %v1860, 0.0
    %v1873 = vadd.f32 %v1861, 0.0
    %v1874 = vadd.f32 %v1862, 0.0
    %v1875 = vadd.f32 %v1863, 0.0
    %v1876 = vadd.f32 %v1864, 0.0
    %v1877 = vadd.f32 %v1865, 0.0
    %v1878 = vadd.f32 %v1866, 0.0
    %v1879 = vadd.f32 %v1867, 0.0
    %v1880 = vadd.f32 %v1868, 0.0
    %v1881 = vadd.f32 %v1869, 0.0
    %v1882 = vadd.f32 %v1870, 0.0
    %v1883 = vadd.f32 %v1871, 0.0
    %vm1884 = vcmask 7168
    %v1885 = vsel %vm1884, %v1872, 0.0
    %v1886 = vsel %vm1884, %v1873, 0.0
    %v1887 = vadd.f32 %v1885, %v1886
    %v1888 = vsel %vm1884, %v1874, 0.0
    %v1889 = vadd.f32 %v1887, %v1888
    %v1890 = vsel %vm1884, %v1875, 0.0
    %v1891 = vadd.f32 %v1889, %v1890
    %v1892 = vsel %vm1884, %v1876, 0.0
    %v1893 = vadd.f32 %v1891, %v1892
    %v1894 = vsel %vm1884, %v1877, 0.0
    %v1895 = vadd.f32 %v1893, %v1894
    %v1896 = vsel %vm1884, %v1878, 0.0
    %v1897 = vadd.f32 %v1895, %v1896
    %v1898 = vsel %vm1884, %v1879, 0.0
    %v1899 = vadd.f32 %v1897, %v1898
    %v1900 = vsel %vm1884, %v1880, 0.0
    %v1901 = vadd.f32 %v1899, %v1900
    %v1902 = vsel %vm1884, %v1881, 0.0
    %v1903 = vadd.f32 %v1901, %v1902
    %v1904 = vsel %vm1884, %v1882, 0.0
    %v1905 = vadd.f32 %v1903, %v1904
    %v1906 = vsel %vm1884, %v1883, 0.0
    %v1907 = vadd.f32 %v1905, %v1906
    %v1908 = vrot.slane %v1907, 4
    %v1909 = vadd.f32 %v1907, %v1908
    %v1910 = vrot.slane %v1909, 2
    %v1911 = vadd.f32 %v1909, %v1910
    %v1912 = vrot.slane %v1911, 1
    %v1913 = vadd.f32 %v1911, %v1912
    %v1914 = vrcp.pop 96.0
    %v1915 = vmul.f32 %v1913, %v1914
    %v1916 = vadd.f32 %v313, 1.0
    %v1917 = vadd.f32 %v316, 1.0
    %v1918 = vmul.f32 %v313, %v313
    %v1919 = vmul.f32 %v316, %v316
    %1922 = vrot.lane.b32.xlu0 %v1918, 16
    %v1923 = vpop.permute.xlu0 %1922
    %1924 = vrot.lane.b32.xlu0 %v1919, 16
    %v1925 = vpop.permute.xlu0 %1924
    %v1928 = vsub.f32 %v1916, %v1923
    %v1929 = vsub.f32 %v1917, %v1925
    %v1930 = vmul.f32 %v313, 1.442695
    %v1931 = vpow.pop %v1930
    %v1932 = vmul.f32 %v316, 1.442695
    %v1933 = vpow.pop %v1932
    %v1934 = vsub.f32 %v1928, %v1931
    %v1935 = vsub.f32 %v1929, %v1933
    %1938 = vrot.lane.b32.xlu0 %v1934, 112
    %v1939 = vpop.permute.xlu0 %1938
    %1940 = vrot.lane.b32.xlu0 %v1935, 112
    %v1941 = vpop.permute.xlu0 %1940
    %v1944 = vsel %vm125, %v1939, 0.0
    %1945 = vadd.xlane.f32.xlu0 %v1944
    %v1946 = vpop.xlane.xlu0 %1945
    %v1947 = vsel %vm125, %v1941, 0.0
    %1948 = vadd.xlane.f32.xlu0 %v1947
    %v1949 = vpop.xlane.xlu0 %1948
    %v1950 = vadd.f32 %v1946, %v1949
    %v1951 = vrot.slane %v1950, 4
    %v1952 = vadd.f32 %v1950, %v1951
    %v1953 = vrot.slane %v1952, 2
    %v1954 = vadd.f32 %v1952, %v1953
    %v1955 = vrot.slane %v1954, 1
    %v1956 = vadd.f32 %v1954, %v1955
    %v1957 = vrcp.pop 256.0
    %v1958 = vmul.f32 %v1956, %v1957
    %v1959 = vmul.f32 %v1958, -0.5
    %v1960 = vstv %s1557
    %v1961 = vmul.f32 %v1960, %v1959
    %v1962 = vadd.f32 %v1915, %v1961
    %vm1963 = vcmp.eq.s32.totalorder %v574, 0
    %1965 = vset.pattern.permute.xlu0 0
    %1966 = vperm.xlu0 %1965, %v1962
    %v1967 = vpop.permute.xlu0 %1966
    %v1969 = vsel %vm1963, %v1967, 0.0
    %vm1970 = vcmp.eq.s32.totalorder %v574, 1
    %1972 = vset.pattern.permute.xlu0 0
    %1973 = vperm.xlu0 %1972, %v1915
    %v1974 = vpop.permute.xlu0 %1973
    %v1976 = vsel %vm1970, %v1974, 0.0
    %v1977 = vadd.f32 %v1969, %v1976
    %vm1978 = vcmp.eq.s32.totalorder %v574, 2
    %v1979 = vsel %vm1978, %v1959, 0.0
    %v1980 = vadd.f32 %v1977, %v1979
    %1981 = vst [vmem:[%s9] sm:$0x1] %v1980
    // Predicated region
    $region42: #{_graph_vae_forward.1} parent=1 // pred_check
      _
    $region43: #{_graph_vae_forward.1} parent=1 // pred_check_branch
      %1983 = sbr.rel (0) target = $region45
    $region44: #{_graph_vae_forward.1} parent=1 // pred_region
      _
    $region45: #{_graph_vae_forward.1} parent=1 // pred_fallthru
      _
    // Predicated region
    $region46: #{_graph_vae_forward.1} parent=1 // pred_check
      _
    $region47: #{_graph_vae_forward.1} parent=1 // pred_check_branch
      %1985 = sbr.rel (0) target = $region49
    $region48: #{_graph_vae_forward.1} parent=1 // pred_region
      _
    $region49: #{_graph_vae_forward.1} parent=1 // pred_fallthru
      _
    %1986 = vsyncpa [#allocation3], 1

</llo_original>
